<compile_context>
chip_gen: v6e
topology: v6e:2x2x1
jax: 0.10.0
libtpu: 0.0.40
codegen_flags: <defaults>
</compile_context>

<pallas_src>
import math

import jax
import jax.numpy as jnp
import numpy as np
from jax.experimental import pallas as pl
from jax.experimental.pallas import tpu as pltpu

# ----------------------------- configuration --------------------------------
B = 2                # batch
C_IN = 4             # n_vars
CONTEXT = 32         # context_window
TARGET = 16          # target_window
PATCH_LEN = 8
STRIDE = 8
PATCH_NUM = (CONTEXT - PATCH_LEN) // STRIDE + 1   # 4
D_MODEL = 32
N_HEADS = 4
D_FF = 64
E_LAYERS = 2
MOVING_AVG = 25
# MultiWaveletTransform defaults hard-coded inside TSWiEncoder:
MWT_K = 8
MWT_C = 128
MWT_L = 3
REVIN_EPS = 1e-5
LN_EPS = 1e-5

PD = PATCH_NUM * D_MODEL          # 128  lane-dense activation width
PF = PATCH_NUM * D_FF             # 256  lane-dense feed-forward width
SLAB_LANES = max(PD, PF)          # 256  weight-slab lane width

ROW_BLOCK = 8                     # (batch*channel) rows per grid step;
                                  # raise to >=256 for large batches on v6e/v7x.

# With these shapes the wavelet decomposition loop inside MWT_CZ1d is empty.
assert math.floor(math.log2(PATCH_NUM)) <= MWT_L, \
    "wavelet branch of MWT_CZ1d would be required (not implemented)"
assert STRIDE == PATCH_LEN and PATCH_NUM * PATCH_LEN == CONTEXT
assert ROW_BLOCK % C_IN == 0 and ROW_BLOCK % 8 == 0
assert PD % 128 == 0 and SLAB_LANES % 128 == 0


# ------------------------- weight-slab row layout ----------------------------
def _build_slab_layout():
    off, cur = {}, 0

    def alloc(name, rows):
        nonlocal cur
        off[name] = cur
        cur += rows

    alloc('emb', CONTEXT)                 # kron(I_P, W_P)               (32, PD)
    for l in range(E_LAYERS):
        alloc(f'att{l}', PD)              # kron(R^T, I + W_fold)        (PD, PD)
        alloc(f'c1{l}', PD)               # kron(I_P, conv1_w)           (PD, PF)
        alloc(f'c2{l}', PF)               # kron(I_P, conv2_w)           (PF, PD)
    alloc('dec2', PD)                     # kron(R^T, I_D)               (PD, PD)
    alloc('avg', PD)                      # kron(I_P, J_D / D)           (PD, PD)
    alloc('head', PD)                     # kron(S, I_D) @ head_perm     (PD, PD) padded
    alloc('vec', 8)                       # bias / LN vectors, one per row
    alloc('rev', ROW_BLOCK)               # lane0: revin_w, lane1: revin_b per row
    return off, cur


SLAB_OFF, SLAB_ROWS = _build_slab_layout()
assert all(v % 8 == 0 for v in SLAB_OFF.values()) and SLAB_ROWS % 8 == 0

# rows inside the 'vec' chunk
VEC_B_EMB = 0                     # W_P bias (tiled) + positional encoding
VEC_B_ATT = 1                     # + layer index
VEC_LN_G = 1 + E_LAYERS
VEC_LN_B = 2 + E_LAYERS
VEC_HEAD_B = 3 + E_LAYERS
assert VEC_HEAD_B < 8


# ------------------------------ fused Pallas kernel --------------------------
def _erf(x):
    # Abramowitz & Stegun 7.1.26 (max abs err ~1.5e-7); exp + approx reciprocal
    # both run on the EUP slot.
    a1, a2, a3, a4, a5 = 0.254829592, -0.284496736, 1.421413741, -1.453152027, 1.061405429
    p = 0.3275911
    ax = jnp.abs(x)
    t = pl.reciprocal(1.0 + p * ax, approx=True)
    poly = ((((a5 * t + a4) * t + a3) * t + a2) * t + a1) * t
    y = 1.0 - poly * jnp.exp(-ax * ax)
    return jnp.where(x < 0.0, -y, y)


def _gelu_exact(x):
    return 0.5 * x * (1.0 + _erf(x * (1.0 / math.sqrt(2.0))))


def _fused_forward_kernel(x_ref, w_ref, o_ref):
    f32 = jnp.float32

    def wmat(name, rows, lanes=PD):
        r0 = SLAB_OFF[name]
        return w_ref[r0:r0 + rows, 0:lanes]

    def wvec(idx):
        r = SLAB_OFF['vec'] + idx
        return w_ref[r:r + 1, 0:PD]                      # (1, PD)

    rv0 = SLAB_OFF['rev']
    rev_w = w_ref[rv0:rv0 + ROW_BLOCK, 0:1]              # (ROW_BLOCK, 1)
    rev_b = w_ref[rv0:rv0 + ROW_BLOCK, 1:2]              # (ROW_BLOCK, 1)

    # ---- RevIN 'norm' (statistics over the time / lane axis) ----
    z = x_ref[...]                                       # (ROW_BLOCK, CONTEXT)
    mean = jnp.mean(z, axis=1, keepdims=True)
    var = jnp.mean(jnp.square(z - mean), axis=1, keepdims=True)   # unbiased=False
    std = jnp.sqrt(var + REVIN_EPS)
    zn = (z - mean) / std * rev_w + rev_b                # (ROW_BLOCK, CONTEXT)

    # ---- patch embedding: one block-diagonal matmul + bias + positional ----
    u = jnp.dot(zn, wmat('emb', CONTEXT),
                preferred_element_type=f32) + wvec(VEC_B_EMB)     # (ROW_BLOCK, PD)

    # ---- Autoformer encoder layers (folded attention chain + decomp1) ----
    for l in range(E_LAYERS):
        # x = decomp1(u + attention(u))  : single matmul (kron(R^T, I+W_fold))
        x = jnp.dot(u, wmat(f'att{l}', PD),
                    preferred_element_type=f32) + wvec(VEC_B_ATT + l)
        # position-wise FF (1x1 convs, bias-free) with exact GELU
        y = _gelu_exact(jnp.dot(x, wmat(f'c1{l}', PD, PF),
                                preferred_element_type=f32))      # (ROW_BLOCK, PF)
        y = jnp.dot(y, wmat(f'c2{l}', PF), preferred_element_type=f32)
        # series_decomp 2
        u = jnp.dot(x + y, wmat('dec2', PD), preferred_element_type=f32)

    # ---- my_Layernorm: per-patch LN statistics via MXU averaging matmuls ----
    avg = wmat('avg', PD)
    mu = jnp.dot(u, avg, preferred_element_type=f32)
    diff = u - mu
    lvar = jnp.dot(diff * diff, avg, preferred_element_type=f32)
    xh = diff * jax.lax.rsqrt(lvar + LN_EPS) * wvec(VEC_LN_G) + wvec(VEC_LN_B)

    # ---- Flatten_Head (time-mean subtraction folded in), single matmul ----
    oh = jnp.dot(xh, wmat('head', PD), preferred_element_type=f32) + wvec(VEC_HEAD_B)
    out = oh[:, :TARGET]                                 # (ROW_BLOCK, TARGET)

    # ---- RevIN 'denorm' ----
    out = (out - rev_b) * pl.reciprocal(rev_w + REVIN_EPS * REVIN_EPS, approx=True)
    o_ref[...] = out * std + mean


def patchtsw_forward(z, fused):
    """z: (B, C_IN, CONTEXT) f32 -> (B, C_IN, TARGET) f32."""
    bsz, nvars, _ = z.shape
    rows = bsz * nvars
    x = z.reshape(rows, CONTEXT)
    nblk = pl.cdiv(rows, ROW_BLOCK)
    padded = nblk * ROW_BLOCK
    if padded != rows:
        x = jnp.pad(x, ((0, padded - rows), (0, 0)))

    out = pl.pallas_call(
        _fused_forward_kernel,
        out_shape=jax.ShapeDtypeStruct((padded, TARGET), jnp.float32),
        grid_spec=pltpu.PrefetchScalarGridSpec(
            num_scalar_prefetch=0,
            grid=(nblk,),
            in_specs=[
                pl.BlockSpec((ROW_BLOCK, CONTEXT), lambda i: (i, 0)),
                # whole weight slab; constant index_map -> fetched once, VMEM-resident
                pl.BlockSpec((SLAB_ROWS, SLAB_LANES), lambda i: (0, 0)),
            ],
            out_specs=pl.BlockSpec((ROW_BLOCK, TARGET), lambda i: (i, 0))),
        compiler_params=pltpu.CompilerParams(dimension_semantics=("parallel",)),
    )(x, fused['slab'])
    return out[:rows].reshape(bsz, nvars, TARGET)


# ------------------------------ parameter init -------------------------------
def init_raw_params(key):
    """Raw parameters mirroring the PyTorch module (same init distributions)."""
    keys = iter(jax.random.split(key, 64))

    def lin(k_in, k_out):
        k1, k2 = jax.random.split(next(keys))
        bound = 1.0 / math.sqrt(k_in)
        w = jax.random.uniform(k1, (k_in, k_out), jnp.float32, -bound, bound)
        b = jax.random.uniform(k2, (k_out,), jnp.float32, -bound, bound)
        return w, b

    raw = {}
    raw['revin_w'] = jnp.ones((C_IN,), jnp.float32)
    raw['revin_b'] = jnp.zeros((C_IN,), jnp.float32)
    raw['W_P_w'], raw['W_P_b'] = lin(PATCH_LEN, D_MODEL)
    raw['W_pos'] = jax.random.uniform(next(keys), (PATCH_NUM, D_MODEL),
                                      jnp.float32, -0.02, 0.02)
    layers = []
    for _ in range(E_LAYERS):
        lp = {}
        lp['v_w'], lp['v_b'] = lin(D_MODEL, D_MODEL)          # value_projection
        lp['out_w'], lp['out_b'] = lin(D_MODEL, D_MODEL)      # out_projection
        lp['lk0_w'], lp['lk0_b'] = lin(D_MODEL, MWT_C * MWT_K)
        lp['lk1_w'], lp['lk1_b'] = lin(MWT_C * MWT_K, D_MODEL)
        lp['t0_w'], lp['t0_b'] = lin(MWT_K, MWT_K)
        lp['conv1_w'], _ = lin(D_MODEL, D_FF)                 # Conv1d k=1, no bias
        lp['conv2_w'], _ = lin(D_FF, D_MODEL)
        layers.append(lp)
    raw['layers'] = layers
    raw['ln_g'] = jnp.ones((D_MODEL,), jnp.float32)
    raw['ln_b'] = jnp.zeros((D_MODEL,), jnp.float32)
    raw['head_w'], raw['head_b'] = lin(D_MODEL * PATCH_NUM, TARGET)
    return raw


def _decomp_residual_matrix(length, kernel_size):
    """R such that R @ x == x - moving_avg(x) (replication-padded AvgPool1d)."""
    pad = (kernel_size - 1) // 2
    m = np.zeros((length, length), np.float64)
    for t in range(length):
        for i in range(kernel_size):
            src = min(max(t + i - pad, 0), length - 1)
            m[t, src] += 1.0 / kernel_size
    return np.eye(length, dtype=np.float64) - m


def fold_params(raw):
    """Host-side float64 constant folding of every linear sub-graph into ONE
    contiguous f32 weight slab laid out for the lane-dense (rows, PD) layout."""
    f64 = np.float64
    g = lambda a: np.asarray(a, f64)

    I_P = np.eye(PATCH_NUM, dtype=f64)
    I_D = np.eye(D_MODEL, dtype=f64)
    R = _decomp_residual_matrix(PATCH_NUM, MOVING_AVG)             # decomp residual
    S = I_P - np.full((PATCH_NUM, PATCH_NUM), 1.0 / PATCH_NUM)     # subtract time-mean

    slab = np.zeros((SLAB_ROWS, SLAB_LANES), f64)

    def put(name, mat):
        r0 = SLAB_OFF[name]
        slab[r0:r0 + mat.shape[0], :mat.shape[1]] = mat

    # patch embedding: kron(I_P, W_P)
    put('emb', np.kron(I_P, g(raw['W_P_w'])))
    b_emb = np.tile(g(raw['W_P_b']), PATCH_NUM) + g(raw['W_pos']).reshape(-1)

    b_att = []
    for l, lp in enumerate(raw['layers']):
        # fold value_proj -> Lk0 -> MWT_CZ1d.T0 -> Lk1 -> out_proj into (D, D)
        w = g(lp['v_w']) @ g(lp['lk0_w'])
        b = g(lp['v_b']) @ g(lp['lk0_w']) + g(lp['lk0_b'])
        w = (w.reshape(D_MODEL, MWT_C, MWT_K) @ g(lp['t0_w'])
             ).reshape(D_MODEL, MWT_C * MWT_K)
        b = (b.reshape(MWT_C, MWT_K) @ g(lp['t0_w']) + g(lp['t0_b'])).reshape(-1)
        w = w @ g(lp['lk1_w']); b = b @ g(lp['lk1_w']) + g(lp['lk1_b'])
        w = w @ g(lp['out_w']); b = b @ g(lp['out_w']) + g(lp['out_b'])
        A = np.eye(D_MODEL) + w                        # residual folded in
        # decomp1 folded in: x = u @ kron(R^T, A) + kron(rowsum(R), b)
        put(f'att{l}', np.kron(R.T, A))
        b_att.append(np.kron(R.sum(axis=1), b))        # ~0 (decomp of a constant)
        put(f'c1{l}', np.kron(I_P, g(lp['conv1_w'])))
        put(f'c2{l}', np.kron(I_P, g(lp['conv2_w'])))

    put('dec2', np.kron(R.T, I_D))
    put('avg', np.kron(I_P, np.full((D_MODEL, D_MODEL), 1.0 / D_MODEL)))

    # Flatten_Head permuted to the lane layout, with the my_Layernorm time-mean
    # subtraction folded in (kron(S, I_D)), zero-padded to PD output lanes.
    head_perm = g(raw['head_w']).reshape(D_MODEL, PATCH_NUM, TARGET) \
                                .transpose(1, 0, 2).reshape(PD, TARGET)
    head_pad = np.zeros((PD, PD), f64)
    head_pad[:, :TARGET] = np.kron(S, I_D) @ head_perm
    put('head', head_pad)

    vec = np.zeros((8, SLAB_LANES), f64)
    vec[VEC_B_EMB, :PD] = b_emb
    for l in range(E_LAYERS):
        vec[VEC_B_ATT + l, :PD] = b_att[l]
    vec[VEC_LN_G, :PD] = np.tile(g(raw['ln_g']), PATCH_NUM)
    vec[VEC_LN_B, :PD] = np.tile(g(raw['ln_b']), PATCH_NUM)
    vec[VEC_HEAD_B, :TARGET] = g(raw['head_b'])
    slab[SLAB_OFF['vec']:SLAB_OFF['vec'] + 8] = vec

    # per-row RevIN affine params (rows inside a block repeat every C_IN)
    reps = ROW_BLOCK // C_IN
    slab[SLAB_OFF['rev']:SLAB_OFF['rev'] + ROW_BLOCK, 0] = np.tile(g(raw['revin_w']), reps)
    slab[SLAB_OFF['rev']:SLAB_OFF['rev'] + ROW_BLOCK, 1] = np.tile(g(raw['revin_b']), reps)

    return {'slab': jnp.asarray(slab.astype(np.float32))}


# ---------------------- pure-JAX unfused reference ---------------------------
def _ref_decomp(x):
    pad = (MOVING_AVG - 1) // 2
    front = jnp.repeat(x[:, :1, :], pad, axis=1)
    end = jnp.repeat(x[:, -1:, :], pad, axis=1)
    xp = jnp.concatenate([front, x, end], axis=1)
    mm = jnp.stack([jnp.mean(xp[:, t:t + MOVING_AVG, :], axis=1)
                    for t in range(x.shape[1])], axis=1)
    return x - mm


def reference_forward(z, raw):
    with jax.default_matmul_precision("highest"):
        zp = jnp.transpose(z, (0, 2, 1))                              # (B, L, C)
        mean = jnp.mean(zp, axis=1, keepdims=True)
        std = jnp.sqrt(jnp.var(zp, axis=1, keepdims=True) + REVIN_EPS)
        zn = (zp - mean) / std * raw['revin_w'] + raw['revin_b']
        zc = jnp.transpose(zn, (0, 2, 1))                             # (B, C, L)

        patches = zc.reshape(B, C_IN, PATCH_NUM, PATCH_LEN)
        x = patches @ raw['W_P_w'] + raw['W_P_b']
        u = x.reshape(B * C_IN, PATCH_NUM, D_MODEL) + raw['W_pos'][None]

        for lp in raw['layers']:
            uf = u.reshape(-1, D_MODEL)
            v = uf @ lp['v_w'] + lp['v_b']
            V = v @ lp['lk0_w'] + lp['lk0_b']
            V = V.reshape(-1, MWT_C, MWT_K) @ lp['t0_w'] + lp['t0_b']
            V = V.reshape(-1, MWT_C * MWT_K) @ lp['lk1_w'] + lp['lk1_b']
            new_x = V @ lp['out_w'] + lp['out_b']
            x1 = u + new_x.reshape(u.shape)
            x1 = _ref_decomp(x1)
            y = jax.nn.gelu(x1.reshape(-1, D_MODEL) @ lp['conv1_w'],
                            approximate=False)
            y = (y @ lp['conv2_w']).reshape(u.shape)
            u = _ref_decomp(x1 + y)

        mu = jnp.mean(u, axis=-1, keepdims=True)
        var = jnp.mean(jnp.square(u - mu), axis=-1, keepdims=True)
        xh = (u - mu) * jax.lax.rsqrt(var + LN_EPS) * raw['ln_g'] + raw['ln_b']
        u = xh - jnp.mean(xh, axis=1, keepdims=True)

        zb = u.reshape(B, C_IN, PATCH_NUM, D_MODEL).transpose(0, 1, 3, 2)
        zf = zb.reshape(B, C_IN, D_MODEL * PATCH_NUM)
        zh = zf @ raw['head_w'] + raw['head_b']                       # (B, C, T)

        zd = jnp.transpose(zh, (0, 2, 1))
        zd = (zd - raw['revin_b']) / (raw['revin_w'] + REVIN_EPS * REVIN_EPS)
        zd = zd * std + mean
        return jnp.transpose(zd, (0, 2, 1))


# ------------------------------------ main -----------------------------------
if __name__ == "__main__":
    key = jax.random.PRNGKey(0)
    pkey, xkey = jax.random.split(key)
    raw = init_raw_params(pkey)
    fused = fold_params(raw)
    z = jax.random.normal(xkey, (B, C_IN, CONTEXT), jnp.float32)

    out = jax.block_until_ready(jax.jit(patchtsw_forward)(z, fused))

    assert out.shape == (B, C_IN, TARGET), out.shape
    assert out.dtype == jnp.float32
    assert bool(jnp.all(jnp.isfinite(out)))

    # Cross-check the fused/folded kernel against the unfused reference.
    # Tolerance allows for MXU precision / fold rounding-order differences.
    ref = jax.block_until_ready(reference_forward(z, raw))
    max_err = float(jnp.max(jnp.abs(out - ref)))
    assert bool(jnp.allclose(out, ref, rtol=3e-2, atol=3e-2)), max_err

    print("KERNEL_OK")
</pallas_src>

<mosaic_0001>
module attributes {stable_mosaic.version = 11 : i64} {
  func.func @_fused_forward_kernel(%arg0: i32, %arg1: memref<8x32xf32, #tpu.memory_space<vmem>>, %arg2: memref<1456x256xf32, #tpu.memory_space<vmem>>, %arg3: memref<8x16xf32, #tpu.memory_space<vmem>>) attributes {dimension_semantics = [#tpu.dimension_semantics<parallel>], iteration_bounds = array<i64: 1>, scalar_prefetch = 0 : i64, scratch_operands = 0 : i64, tpu.core_type = #tpu.core_type<tc>, window_params = [{transform_indices = @transform_0, window_bounds = array<i64: 8, 32>}, {pipeline_mode = #tpu.pipeline_mode<synchronous>, transform_indices = @transform_1, window_bounds = array<i64: 1456, 256>}, {transform_indices = @transform_2, window_bounds = array<i64: 8, 16>}]} {
    %c1448 = arith.constant 1448 : index
    %c0 = arith.constant 0 : index
    %0 = vector.load %arg2[%c1448, %c0] : memref<1456x256xf32, #tpu.memory_space<vmem>>, vector<8x1xf32>
    %c1448_0 = arith.constant 1448 : index
    %c1 = arith.constant 1 : index
    %1 = vector.load %arg2[%c1448_0, %c1] : memref<1456x256xf32, #tpu.memory_space<vmem>>, vector<8x1xf32>
    %c0_1 = arith.constant 0 : index
    %c0_2 = arith.constant 0 : index
    %2 = vector.load %arg1[%c0_1, %c0_2] : memref<8x32xf32, #tpu.memory_space<vmem>>, vector<8x32xf32>
    %cst = arith.constant dense<0.000000e+00> : vector<8xf32>
    %3 = vector.multi_reduction <add>, %2, %cst [1] : vector<8x32xf32> to vector<8xf32>
    %4 = vector.shape_cast %3 : vector<8xf32> to vector<8x1xf32>
    %cst_3 = arith.constant 3.200000e+01 : f32
    %5 = vector.broadcast %cst_3 : f32 to vector<8x1xf32>
    %6 = arith.divf %4, %5 : vector<8x1xf32>
    %7 = vector.broadcast %6 : vector<8x1xf32> to vector<8x32xf32>
    %8 = arith.subf %2, %7 : vector<8x32xf32>
    %9 = arith.mulf %8, %8 : vector<8x32xf32>
    %cst_4 = arith.constant dense<0.000000e+00> : vector<8xf32>
    %10 = vector.multi_reduction <add>, %9, %cst_4 [1] : vector<8x32xf32> to vector<8xf32>
    %11 = vector.shape_cast %10 : vector<8xf32> to vector<8x1xf32>
    %cst_5 = arith.constant 3.200000e+01 : f32
    %12 = vector.broadcast %cst_5 : f32 to vector<8x1xf32>
    %13 = arith.divf %11, %12 : vector<8x1xf32>
    %cst_6 = arith.constant 9.99999974E-6 : f32
    %14 = vector.broadcast %cst_6 : f32 to vector<8x1xf32>
    %15 = arith.addf %13, %14 : vector<8x1xf32>
    %16 = math.sqrt %15 : vector<8x1xf32>
    %17 = vector.broadcast %6 : vector<8x1xf32> to vector<8x32xf32>
    %18 = arith.subf %2, %17 : vector<8x32xf32>
    %19 = vector.broadcast %16 : vector<8x1xf32> to vector<8x32xf32>
    %20 = arith.divf %18, %19 : vector<8x32xf32>
    %21 = vector.broadcast %0 : vector<8x1xf32> to vector<8x32xf32>
    %22 = arith.mulf %20, %21 : vector<8x32xf32>
    %23 = vector.broadcast %1 : vector<8x1xf32> to vector<8x32xf32>
    %24 = arith.addf %22, %23 : vector<8x32xf32>
    %c0_7 = arith.constant 0 : index
    %c0_8 = arith.constant 0 : index
    %25 = vector.load %arg2[%c0_7, %c0_8] : memref<1456x256xf32, #tpu.memory_space<vmem>>, vector<32x128xf32>
    %cst_9 = arith.constant dense<0.000000e+00> : vector<8x128xf32>
    %26 = tpu.matmul %24, %25, %cst_9 {dimension_numbers = #tpu.dot_dimension_numbers<[1], [0], [0], [1], [0, 0, 1, 1], [], []>} : vector<8x32xf32>, vector<32x128xf32>, vector<8x128xf32> -> vector<8x128xf32>
    %c1440 = arith.constant 1440 : index
    %c0_10 = arith.constant 0 : index
    %27 = vector.load %arg2[%c1440, %c0_10] : memref<1456x256xf32, #tpu.memory_space<vmem>>, vector<1x128xf32>
    %28 = vector.broadcast %27 : vector<1x128xf32> to vector<8x128xf32>
    %29 = arith.addf %26, %28 : vector<8x128xf32>
    %c32 = arith.constant 32 : index
    %c0_11 = arith.constant 0 : index
    %30 = vector.load %arg2[%c32, %c0_11] : memref<1456x256xf32, #tpu.memory_space<vmem>>, vector<128x128xf32>
    %cst_12 = arith.constant dense<0.000000e+00> : vector<8x128xf32>
    %31 = tpu.matmul %29, %30, %cst_12 {dimension_numbers = #tpu.dot_dimension_numbers<[1], [0], [0], [1], [0, 0, 1, 1], [], []>} : vector<8x128xf32>, vector<128x128xf32>, vector<8x128xf32> -> vector<8x128xf32>
    %c1441 = arith.constant 1441 : index
    %c0_13 = arith.constant 0 : index
    %32 = vector.load %arg2[%c1441, %c0_13] : memref<1456x256xf32, #tpu.memory_space<vmem>>, vector<1x128xf32>
    %33 = vector.broadcast %32 : vector<1x128xf32> to vector<8x128xf32>
    %34 = arith.addf %31, %33 : vector<8x128xf32>
    %c160 = arith.constant 160 : index
    %c0_14 = arith.constant 0 : index
    %35 = vector.load %arg2[%c160, %c0_14] : memref<1456x256xf32, #tpu.memory_space<vmem>>, vector<128x256xf32>
    %cst_15 = arith.constant dense<0.000000e+00> : vector<8x256xf32>
    %36 = tpu.matmul %34, %35, %cst_15 {dimension_numbers = #tpu.dot_dimension_numbers<[1], [0], [0], [1], [0, 0, 1, 1], [], []>} : vector<8x128xf32>, vector<128x256xf32>, vector<8x256xf32> -> vector<8x256xf32>
    %cst_16 = arith.constant 5.000000e-01 : f32
    %37 = vector.broadcast %cst_16 : f32 to vector<8x256xf32>
    %38 = arith.mulf %37, %36 : vector<8x256xf32>
    %cst_17 = arith.constant 0.707106769 : f32
    %39 = vector.broadcast %cst_17 : f32 to vector<8x256xf32>
    %40 = arith.mulf %36, %39 : vector<8x256xf32>
    %41 = math.absf %40 : vector<8x256xf32>
    %cst_18 = arith.constant 0.327591091 : f32
    %42 = vector.broadcast %cst_18 : f32 to vector<8x256xf32>
    %43 = arith.mulf %42, %41 : vector<8x256xf32>
    %cst_19 = arith.constant 1.000000e+00 : f32
    %44 = vector.broadcast %cst_19 : f32 to vector<8x256xf32>
    %45 = arith.addf %44, %43 : vector<8x256xf32>
    %46 = tpu.reciprocal %45 {approx = true} : vector<8x256xf32> -> vector<8x256xf32>
    %cst_20 = arith.constant 1.06140542 : f32
    %47 = vector.broadcast %cst_20 : f32 to vector<8x256xf32>
    %48 = arith.mulf %47, %46 : vector<8x256xf32>
    %cst_21 = arith.constant -1.45315206 : f32
    %49 = vector.broadcast %cst_21 : f32 to vector<8x256xf32>
    %50 = arith.addf %48, %49 : vector<8x256xf32>
    %51 = arith.mulf %50, %46 : vector<8x256xf32>
    %cst_22 = arith.constant 1.42141378 : f32
    %52 = vector.broadcast %cst_22 : f32 to vector<8x256xf32>
    %53 = arith.addf %51, %52 : vector<8x256xf32>
    %54 = arith.mulf %53, %46 : vector<8x256xf32>
    %cst_23 = arith.constant -0.284496725 : f32
    %55 = vector.broadcast %cst_23 : f32 to vector<8x256xf32>
    %56 = arith.addf %54, %55 : vector<8x256xf32>
    %57 = arith.mulf %56, %46 : vector<8x256xf32>
    %cst_24 = arith.constant 0.254829586 : f32
    %58 = vector.broadcast %cst_24 : f32 to vector<8x256xf32>
    %59 = arith.addf %57, %58 : vector<8x256xf32>
    %60 = arith.mulf %59, %46 : vector<8x256xf32>
    %cst_25 = arith.constant 0.000000e+00 : f32
    %61 = vector.broadcast %cst_25 : f32 to vector<8x256xf32>
    %62 = arith.subf %61, %41 : vector<8x256xf32>
    %63 = arith.mulf %62, %41 : vector<8x256xf32>
    %64 = math.exp %63 : vector<8x256xf32>
    %65 = arith.mulf %60, %64 : vector<8x256xf32>
    %cst_26 = arith.constant 1.000000e+00 : f32
    %66 = vector.broadcast %cst_26 : f32 to vector<8x256xf32>
    %67 = arith.subf %66, %65 : vector<8x256xf32>
    %cst_27 = arith.constant 0.000000e+00 : f32
    %68 = vector.broadcast %cst_27 : f32 to vector<8x256xf32>
    %69 = arith.cmpf olt, %40, %68 : vector<8x256xf32>
    %cst_28 = arith.constant 0.000000e+00 : f32
    %70 = vector.broadcast %cst_28 : f32 to vector<8x256xf32>
    %71 = arith.subf %70, %67 : vector<8x256xf32>
    %72 = arith.select %69, %71, %67 : vector<8x256xi1>, vector<8x256xf32>
    %cst_29 = arith.constant 1.000000e+00 : f32
    %73 = vector.broadcast %cst_29 : f32 to vector<8x256xf32>
    %74 = arith.addf %73, %72 : vector<8x256xf32>
    %75 = arith.mulf %38, %74 : vector<8x256xf32>
    %c288 = arith.constant 288 : index
    %c0_30 = arith.constant 0 : index
    %76 = vector.load %arg2[%c288, %c0_30] : memref<1456x256xf32, #tpu.memory_space<vmem>>, vector<256x128xf32>
    %cst_31 = arith.constant dense<0.000000e+00> : vector<8x128xf32>
    %77 = tpu.matmul %75, %76, %cst_31 {dimension_numbers = #tpu.dot_dimension_numbers<[1], [0], [0], [1], [0, 0, 1, 1], [], []>} : vector<8x256xf32>, vector<256x128xf32>, vector<8x128xf32> -> vector<8x128xf32>
    %78 = arith.addf %34, %77 : vector<8x128xf32>
    %c1056 = arith.constant 1056 : index
    %c0_32 = arith.constant 0 : index
    %79 = vector.load %arg2[%c1056, %c0_32] : memref<1456x256xf32, #tpu.memory_space<vmem>>, vector<128x128xf32>
    %cst_33 = arith.constant dense<0.000000e+00> : vector<8x128xf32>
    %80 = tpu.matmul %78, %79, %cst_33 {dimension_numbers = #tpu.dot_dimension_numbers<[1], [0], [0], [1], [0, 0, 1, 1], [], []>} : vector<8x128xf32>, vector<128x128xf32>, vector<8x128xf32> -> vector<8x128xf32>
    %c544 = arith.constant 544 : index
    %c0_34 = arith.constant 0 : index
    %81 = vector.load %arg2[%c544, %c0_34] : memref<1456x256xf32, #tpu.memory_space<vmem>>, vector<128x128xf32>
    %cst_35 = arith.constant dense<0.000000e+00> : vector<8x128xf32>
    %82 = tpu.matmul %80, %81, %cst_35 {dimension_numbers = #tpu.dot_dimension_numbers<[1], [0], [0], [1], [0, 0, 1, 1], [], []>} : vector<8x128xf32>, vector<128x128xf32>, vector<8x128xf32> -> vector<8x128xf32>
    %c1442 = arith.constant 1442 : index
    %c0_36 = arith.constant 0 : index
    %83 = vector.load %arg2[%c1442, %c0_36] : memref<1456x256xf32, #tpu.memory_space<vmem>>, vector<1x128xf32>
    %84 = vector.broadcast %83 : vector<1x128xf32> to vector<8x128xf32>
    %85 = arith.addf %82, %84 : vector<8x128xf32>
    %c672 = arith.constant 672 : index
    %c0_37 = arith.constant 0 : index
    %86 = vector.load %arg2[%c672, %c0_37] : memref<1456x256xf32, #tpu.memory_space<vmem>>, vector<128x256xf32>
    %cst_38 = arith.constant dense<0.000000e+00> : vector<8x256xf32>
    %87 = tpu.matmul %85, %86, %cst_38 {dimension_numbers = #tpu.dot_dimension_numbers<[1], [0], [0], [1], [0, 0, 1, 1], [], []>} : vector<8x128xf32>, vector<128x256xf32>, vector<8x256xf32> -> vector<8x256xf32>
    %cst_39 = arith.constant 5.000000e-01 : f32
    %88 = vector.broadcast %cst_39 : f32 to vector<8x256xf32>
    %89 = arith.mulf %88, %87 : vector<8x256xf32>
    %cst_40 = arith.constant 0.707106769 : f32
    %90 = vector.broadcast %cst_40 : f32 to vector<8x256xf32>
    %91 = arith.mulf %87, %90 : vector<8x256xf32>
    %92 = math.absf %91 : vector<8x256xf32>
    %cst_41 = arith.constant 0.327591091 : f32
    %93 = vector.broadcast %cst_41 : f32 to vector<8x256xf32>
    %94 = arith.mulf %93, %92 : vector<8x256xf32>
    %cst_42 = arith.constant 1.000000e+00 : f32
    %95 = vector.broadcast %cst_42 : f32 to vector<8x256xf32>
    %96 = arith.addf %95, %94 : vector<8x256xf32>
    %97 = tpu.reciprocal %96 {approx = true} : vector<8x256xf32> -> vector<8x256xf32>
    %cst_43 = arith.constant 1.06140542 : f32
    %98 = vector.broadcast %cst_43 : f32 to vector<8x256xf32>
    %99 = arith.mulf %98, %97 : vector<8x256xf32>
    %cst_44 = arith.constant -1.45315206 : f32
    %100 = vector.broadcast %cst_44 : f32 to vector<8x256xf32>
    %101 = arith.addf %99, %100 : vector<8x256xf32>
    %102 = arith.mulf %101, %97 : vector<8x256xf32>
    %cst_45 = arith.constant 1.42141378 : f32
    %103 = vector.broadcast %cst_45 : f32 to vector<8x256xf32>
    %104 = arith.addf %102, %103 : vector<8x256xf32>
    %105 = arith.mulf %104, %97 : vector<8x256xf32>
    %cst_46 = arith.constant -0.284496725 : f32
    %106 = vector.broadcast %cst_46 : f32 to vector<8x256xf32>
    %107 = arith.addf %105, %106 : vector<8x256xf32>
    %108 = arith.mulf %107, %97 : vector<8x256xf32>
    %cst_47 = arith.constant 0.254829586 : f32
    %109 = vector.broadcast %cst_47 : f32 to vector<8x256xf32>
    %110 = arith.addf %108, %109 : vector<8x256xf32>
    %111 = arith.mulf %110, %97 : vector<8x256xf32>
    %cst_48 = arith.constant 0.000000e+00 : f32
    %112 = vector.broadcast %cst_48 : f32 to vector<8x256xf32>
    %113 = arith.subf %112, %92 : vector<8x256xf32>
    %114 = arith.mulf %113, %92 : vector<8x256xf32>
    %115 = math.exp %114 : vector<8x256xf32>
    %116 = arith.mulf %111, %115 : vector<8x256xf32>
    %cst_49 = arith.constant 1.000000e+00 : f32
    %117 = vector.broadcast %cst_49 : f32 to vector<8x256xf32>
    %118 = arith.subf %117, %116 : vector<8x256xf32>
    %cst_50 = arith.constant 0.000000e+00 : f32
    %119 = vector.broadcast %cst_50 : f32 to vector<8x256xf32>
    %120 = arith.cmpf olt, %91, %119 : vector<8x256xf32>
    %cst_51 = arith.constant 0.000000e+00 : f32
    %121 = vector.broadcast %cst_51 : f32 to vector<8x256xf32>
    %122 = arith.subf %121, %118 : vector<8x256xf32>
    %123 = arith.select %120, %122, %118 : vector<8x256xi1>, vector<8x256xf32>
    %cst_52 = arith.constant 1.000000e+00 : f32
    %124 = vector.broadcast %cst_52 : f32 to vector<8x256xf32>
    %125 = arith.addf %124, %123 : vector<8x256xf32>
    %126 = arith.mulf %89, %125 : vector<8x256xf32>
    %c800 = arith.constant 800 : index
    %c0_53 = arith.constant 0 : index
    %127 = vector.load %arg2[%c800, %c0_53] : memref<1456x256xf32, #tpu.memory_space<vmem>>, vector<256x128xf32>
    %cst_54 = arith.constant dense<0.000000e+00> : vector<8x128xf32>
    %128 = tpu.matmul %126, %127, %cst_54 {dimension_numbers = #tpu.dot_dimension_numbers<[1], [0], [0], [1], [0, 0, 1, 1], [], []>} : vector<8x256xf32>, vector<256x128xf32>, vector<8x128xf32> -> vector<8x128xf32>
    %129 = arith.addf %85, %128 : vector<8x128xf32>
    %c1056_55 = arith.constant 1056 : index
    %c0_56 = arith.constant 0 : index
    %130 = vector.load %arg2[%c1056_55, %c0_56] : memref<1456x256xf32, #tpu.memory_space<vmem>>, vector<128x128xf32>
    %cst_57 = arith.constant dense<0.000000e+00> : vector<8x128xf32>
    %131 = tpu.matmul %129, %130, %cst_57 {dimension_numbers = #tpu.dot_dimension_numbers<[1], [0], [0], [1], [0, 0, 1, 1], [], []>} : vector<8x128xf32>, vector<128x128xf32>, vector<8x128xf32> -> vector<8x128xf32>
    %c1184 = arith.constant 1184 : index
    %c0_58 = arith.constant 0 : index
    %132 = vector.load %arg2[%c1184, %c0_58] : memref<1456x256xf32, #tpu.memory_space<vmem>>, vector<128x128xf32>
    %cst_59 = arith.constant dense<0.000000e+00> : vector<8x128xf32>
    %133 = tpu.matmul %131, %132, %cst_59 {dimension_numbers = #tpu.dot_dimension_numbers<[1], [0], [0], [1], [0, 0, 1, 1], [], []>} : vector<8x128xf32>, vector<128x128xf32>, vector<8x128xf32> -> vector<8x128xf32>
    %134 = arith.subf %131, %133 : vector<8x128xf32>
    %135 = arith.mulf %134, %134 : vector<8x128xf32>
    %cst_60 = arith.constant dense<0.000000e+00> : vector<8x128xf32>
    %136 = tpu.matmul %135, %132, %cst_60 {dimension_numbers = #tpu.dot_dimension_numbers<[1], [0], [0], [1], [0, 0, 1, 1], [], []>} : vector<8x128xf32>, vector<128x128xf32>, vector<8x128xf32> -> vector<8x128xf32>
    %cst_61 = arith.constant 9.99999974E-6 : f32
    %137 = vector.broadcast %cst_61 : f32 to vector<8x128xf32>
    %138 = arith.addf %136, %137 : vector<8x128xf32>
    %139 = math.rsqrt %138 : vector<8x128xf32>
    %140 = arith.mulf %134, %139 : vector<8x128xf32>
    %c1443 = arith.constant 1443 : index
    %c0_62 = arith.constant 0 : index
    %141 = vector.load %arg2[%c1443, %c0_62] : memref<1456x256xf32, #tpu.memory_space<vmem>>, vector<1x128xf32>
    %142 = vector.broadcast %141 : vector<1x128xf32> to vector<8x128xf32>
    %143 = arith.mulf %140, %142 : vector<8x128xf32>
    %c1444 = arith.constant 1444 : index
    %c0_63 = arith.constant 0 : index
    %144 = vector.load %arg2[%c1444, %c0_63] : memref<1456x256xf32, #tpu.memory_space<vmem>>, vector<1x128xf32>
    %145 = vector.broadcast %144 : vector<1x128xf32> to vector<8x128xf32>
    %146 = arith.addf %143, %145 : vector<8x128xf32>
    %c1312 = arith.constant 1312 : index
    %c0_64 = arith.constant 0 : index
    %147 = vector.load %arg2[%c1312, %c0_64] : memref<1456x256xf32, #tpu.memory_space<vmem>>, vector<128x128xf32>
    %cst_65 = arith.constant dense<0.000000e+00> : vector<8x128xf32>
    %148 = tpu.matmul %146, %147, %cst_65 {dimension_numbers = #tpu.dot_dimension_numbers<[1], [0], [0], [1], [0, 0, 1, 1], [], []>} : vector<8x128xf32>, vector<128x128xf32>, vector<8x128xf32> -> vector<8x128xf32>
    %c1445 = arith.constant 1445 : index
    %c0_66 = arith.constant 0 : index
    %149 = vector.load %arg2[%c1445, %c0_66] : memref<1456x256xf32, #tpu.memory_space<vmem>>, vector<1x128xf32>
    %150 = vector.broadcast %149 : vector<1x128xf32> to vector<8x128xf32>
    %151 = arith.addf %148, %150 : vector<8x128xf32>
    %152 = vector.extract_strided_slice %151 {offsets = [0, 0], sizes = [8, 16], strides = [1, 1]} : vector<8x128xf32> to vector<8x16xf32>
    %153 = vector.broadcast %1 : vector<8x1xf32> to vector<8x16xf32>
    %154 = arith.subf %152, %153 : vector<8x16xf32>
    %cst_67 = arith.constant 1.000000e-10 : f32
    %155 = vector.broadcast %cst_67 : f32 to vector<8x1xf32>
    %156 = arith.addf %0, %155 : vector<8x1xf32>
    %157 = tpu.reciprocal %156 {approx = true} : vector<8x1xf32> -> vector<8x1xf32>
    %158 = vector.broadcast %157 : vector<8x1xf32> to vector<8x16xf32>
    %159 = arith.mulf %154, %158 : vector<8x16xf32>
    %160 = vector.broadcast %16 : vector<8x1xf32> to vector<8x16xf32>
    %161 = arith.mulf %159, %160 : vector<8x16xf32>
    %162 = vector.broadcast %6 : vector<8x1xf32> to vector<8x16xf32>
    %163 = arith.addf %161, %162 : vector<8x16xf32>
    %c0_68 = arith.constant 0 : index
    %c0_69 = arith.constant 0 : index
    %164 = vector.load %arg3[%c0_68, %c0_69] : memref<8x16xf32, #tpu.memory_space<vmem>>, vector<8x16xf32>
    tpu.vector_store %arg3[%c0_68, %c0_69], %163 {strides = array<i32>} : memref<8x16xf32, #tpu.memory_space<vmem>>, vector<8x16xf32>,
    return
  }
  func.func @transform_0(%arg0: i32) -> (i32, i32) {
    %c0_i32 = arith.constant 0 : i32
    %c0_i32_0 = arith.constant 0 : i32
    return %arg0, %c0_i32 : i32, i32
  }
  func.func @transform_1(%arg0: i32) -> (i32, i32) {
    %c0_i32 = arith.constant 0 : i32
    %c0_i32_0 = arith.constant 0 : i32
    %c0_i32_1 = arith.constant 0 : i32
    return %c0_i32, %c0_i32_0 : i32, i32
  }
  func.func @transform_2(%arg0: i32) -> (i32, i32) {
    %c0_i32 = arith.constant 0 : i32
    %c0_i32_0 = arith.constant 0 : i32
    return %arg0, %c0_i32 : i32, i32
  }
}

</mosaic_0001>

<llo_original>
// kernel: patchtsw_forward.1
$region0: #{patchtsw_forward.1}
  #allocation0 [shape = 'u32[]', space=smem, size = 0x4, offset = 0x4, fixed_abs, tag = 'smem constant byte address 0x4 - core index']
  #allocation1 [shape = 'u32[144,128]{1,0:T(1,128)}', space=vmem, size = 0x12000, scoped, tag = 'internal scratch']
  %s0 = inlined_call_operand.hbm [shape: f32[8,32], index: 0, kind: input, shape index: {}]
  %s1 = inlined_call_operand.hbm [shape: f32[1456,256], index: 1, kind: input, shape index: {}]
  %s2 = inlined_call_operand.hbm [shape: f32[8,16], index: 2, kind: output, shape index: {}]
  %s3 = sld [smem:[#allocation0]]
  $region26: #{patchtsw_forward.1} parent=0
    _
  %s5 = ssub.s32 1, %s3
  %s6 = scalar_select 0, %s5, %s3
  $region1: #{patchtsw_forward.1} parent=0
    #allocation2 [shape = 'u8[4096]{0}', space=vmem, size = 0x1000, scoped, tag = 'input window, operand 0, single buffered']
    #allocation3 [shape = 's32[1]{0}', space=sflag, size = 0x4, scoped, tag = 'scoped memory for patchtsw_forward.1']
    #allocation4 [shape = 's32[1]{0}', space=sflag, size = 0x4, scoped, tag = 'scoped memory for patchtsw_forward.1']
    #allocation5 [shape = 'u8[1490944]{0}', space=vmem, size = 0x16c000, scoped, tag = 'input window, operand 1, single buffered']
    #allocation6 [shape = 's32[1]{0}', space=sflag, size = 0x4, scoped, tag = 'scoped memory for patchtsw_forward.1']
    #allocation7 [shape = 'u8[4096]{0}', space=vmem, size = 0x1000, scoped, tag = 'output window, operand 0, single buffered']
    %7 = vsyncpa [#allocation3], 0
    %8 = vsyncpa [#allocation6], 0
    %9 = vsyncpa [#allocation4], 0
    // Predicated region
    $region2: #{patchtsw_forward.1} parent=1 // pred_check
      _
    $region3: #{patchtsw_forward.1} parent=1 // pred_check_branch
      %11 = sbr.rel (0) target = $region5
    $region4: #{patchtsw_forward.1} parent=1 // pred_region
      %s13 = ssub.s32 128, 128
      %14 = vsyncadd [#allocation3], %s13
      %s16 = sshll.u32 [#allocation2], 4
      %s17 = int_to_ptr.vmem [resolvable:$true] %s16
      %19 = dma.hbm_to_vmem [thread:$0]  %s0, 128, %s17, [#allocation3]
    $region5: #{patchtsw_forward.1} parent=1 // pred_fallthru
      _
    // Predicated region
    $region6: #{patchtsw_forward.1} parent=1 // pred_check
      _
    $region7: #{patchtsw_forward.1} parent=1 // pred_check_branch
      %21 = sbr.rel (0) target = $region9
    $region8: #{patchtsw_forward.1} parent=1 // pred_region
      %s23 = ssub.s32 46592, 46592
      %24 = vsyncadd [#allocation6], %s23
      %s25 = sshll.u32 [#allocation5], 4
      %s26 = int_to_ptr.vmem [resolvable:$true] %s25
      %31 = dma.hbm_to_vmem [thread:$0]  %s1, 46592, %s26, [#allocation6], 256, 256, 16
    $region9: #{patchtsw_forward.1} parent=1 // pred_fallthru
      _
    // Predicated region
    $region10: #{patchtsw_forward.1} parent=1 // pred_check
      _
    $region11: #{patchtsw_forward.1} parent=1 // pred_check_branch
      %33 = sbr.rel (0) target = $region13
    $region12: #{patchtsw_forward.1} parent=1 // pred_region
      %34 = dma.done [#allocation3], 128
    $region13: #{patchtsw_forward.1} parent=1 // pred_fallthru
      _
    // Predicated region
    $region14: #{patchtsw_forward.1} parent=1 // pred_check
      _
    $region15: #{patchtsw_forward.1} parent=1 // pred_check_branch
      %36 = sbr.rel (0) target = $region17
    $region16: #{patchtsw_forward.1} parent=1 // pred_region
      %37 = dma.done [#allocation6], 46592
    $region17: #{patchtsw_forward.1} parent=1 // pred_fallthru
      _
    %v38 = vld [vmem:[#allocation5 + $0xb50] sm:$0xff]
    %v39 = vld [vmem:[#allocation2] sm:$0xff]
    %vm40 = vcmask 261120
    %v41 = vsel %vm40, %v39, 0.0
    %42 = vadd.xlane.f32.xlu0 %v41
    %v43 = vpop.xlane.xlu0 %42
    %v44 = vrcp.pop 32.0
    %v45 = vmul.f32 %v43, %v44
    %v46 = vsub.f32 %v39, %v45
    %v47 = vmul.f32 %v46, %v46
    %v48 = vsel %vm40, %v47, 0.0
    %49 = vadd.xlane.f32.xlu0 %v48
    %v50 = vpop.xlane.xlu0 %49
    %v51 = vmul.f32 %v50, %v44
    %v52 = vadd.f32 %v51, 1e-05
    %v53 = vrsqrt.pop %v52
    %v54 = vmul.f32 %v52, %v53
    %vm55 = vcmp.eq.f32.partialorder %v52, inf
    %v56 = vsel %vm55, %v52, %v54
    %vm57 = vcmp.eq.f32.partialorder %v52, 0.0
    %v58 = vand.u32 %v52, 2147483648
    %v59 = vsel %vm57, %v58, %v56
    %v60 = vrcp.pop %v59
    %v61 = vmul.f32 %v46, %v60
    %63 = vset.pattern.permute.xlu0 0
    %64 = vperm.xlu0 %63, %v38
    %v65 = vpop.permute.xlu0 %64
    %v67 = vmul.f32 %v61, %v65
    %68 = vset.pattern.permute.xlu0 1
    %69 = vperm.xlu0 %68, %v38
    %v70 = vpop.permute.xlu0 %69
    %v72 = vadd.f32 %v67, %v70
    %v73 = vld [vmem:[#allocation5] sm:$0xff]
    %v74 = vld [vmem:[#allocation5 + $0x10] sm:$0xff]
    %v75 = vld [vmem:[#allocation5 + $0x20] sm:$0xff]
    %v76 = vld [vmem:[#allocation5 + $0x30] sm:$0xff]
    %v77 = vld [vmem:[#allocation5 + $0xb40] ss:$0 sm:$0xff]
    %v79 = vsel %vm40, %v72, 0
    %81 = vmatprep.subr.mxu0 0.0
    %82 = vmatpush1.msra.mxu0 0.0
    %83 = vmatprep.subr.mxu0 0.0
    %84 = vmatpush1.msra.mxu0 0.0
    %85 = vmatprep.subr.mxu0 0.0
    %86 = vmatpush1.msra.mxu0 0.0
    %87 = vmatprep.subr.mxu0 0.0
    %88 = vmatpush1.msra.mxu0 0.0
    %89 = vmatprep.subr.mxu0 0.0
    %90 = vmatpush1.msra.mxu0 0.0
    %91 = vmatprep.subr.mxu0 0.0
    %92 = vmatpush1.msra.mxu0 0.0
    %93 = vmatprep.subr.mxu0 0.0
    %94 = vmatpush1.msra.mxu0 0.0
    %95 = vmatprep.subr.mxu0 0.0
    %96 = vmatpush1.msra.mxu0 0.0
    %97 = vmatprep.subr.mxu0 0.0
    %98 = vmatpush1.msra.mxu0 0.0
    %99 = vmatprep.subr.mxu0 0.0
    %100 = vmatpush1.msra.mxu0 0.0
    %101 = vmatprep.subr.mxu0 0.0
    %102 = vmatpush1.msra.mxu0 0.0
    %103 = vmatprep.subr.mxu0 0.0
    %104 = vmatpush1.msra.mxu0 0.0
    %105 = vmatprep.subr.mxu0 0.0
    %106 = vmatpush1.msra.mxu0 %v76
    %107 = vmatprep.subr.mxu0 0.0
    %108 = vmatpush1.msra.mxu0 %v75
    %109 = vmatprep.subr.mxu0 0.0
    %110 = vmatpush1.msra.mxu0 %v74
    %111 = vmatprep.subr.mxu0 0.0
    %112 = vmatpush1.msra.mxu0 %v73
    %113 = vmatprep.subr.mxu0 0.0
    %114 = vmatpush2.msra.mxu0 0.0
    %115 = vmatprep.subr.mxu0 0.0
    %116 = vmatpush2.msra.mxu0 0.0
    %117 = vmatprep.subr.mxu0 0.0
    %118 = vmatpush2.msra.mxu0 0.0
    %119 = vmatprep.subr.mxu0 0.0
    %120 = vmatpush2.msra.mxu0 0.0
    %121 = vmatprep.subr.mxu0 0.0
    %122 = vmatpush2.msra.mxu0 0.0
    %123 = vmatprep.subr.mxu0 0.0
    %124 = vmatpush2.msra.mxu0 0.0
    %125 = vmatprep.subr.mxu0 0.0
    %126 = vmatpush2.msra.mxu0 0.0
    %127 = vmatprep.subr.mxu0 0.0
    %128 = vmatpush2.msra.mxu0 0.0
    %129 = vmatprep.subr.mxu0 0.0
    %130 = vmatpush2.msra.mxu0 0.0
    %131 = vmatprep.subr.mxu0 0.0
    %132 = vmatpush2.msra.mxu0 0.0
    %133 = vmatprep.subr.mxu0 0.0
    %134 = vmatpush2.msra.mxu0 0.0
    %135 = vmatprep.subr.mxu0 0.0
    %136 = vmatpush2.msra.mxu0 0.0
    %137 = vmatprep.subr.mxu0 0.0
    %138 = vmatpush2.msra.mxu0 0.0
    %139 = vmatprep.subr.mxu0 0.0
    %140 = vmatpush2.msra.mxu0 0.0
    %141 = vmatprep.subr.mxu0 0.0
    %142 = vmatpush2.msra.mxu0 0.0
    %143 = vmatprep.subr.mxu0 0.0
    %144 = vmatpush2.msra.mxu0 0.0
    %145 = vmatprep.mubr.f32.mxu0 0.0
    %146 = vmatmul.mubr.f32.gmra.mxu0 %v79
    %v147 = vpop.f32.mrf.mxu0
    %v148 = vadd.f32 %v77, %v147
    %v149 = vpop.f32.mrf.mxu0
    %150 = vdwg.mxu0
    %v151 = vld [vmem:[#allocation5 + $0x40] sm:$0xff]
    %v152 = vld [vmem:[#allocation5 + $0x50] sm:$0xff]
    %v153 = vld [vmem:[#allocation5 + $0x60] sm:$0xff]
    %v154 = vld [vmem:[#allocation5 + $0x70] sm:$0xff]
    %v155 = vld [vmem:[#allocation5 + $0x80] sm:$0xff]
    %v156 = vld [vmem:[#allocation5 + $0x90] sm:$0xff]
    %v157 = vld [vmem:[#allocation5 + $0xa0] sm:$0xff]
    %v158 = vld [vmem:[#allocation5 + $0xb0] sm:$0xff]
    %v159 = vld [vmem:[#allocation5 + $0xc0] sm:$0xff]
    %v160 = vld [vmem:[#allocation5 + $0xd0] sm:$0xff]
    %v161 = vld [vmem:[#allocation5 + $0xe0] sm:$0xff]
    %v162 = vld [vmem:[#allocation5 + $0xf0] sm:$0xff]
    %v163 = vld [vmem:[#allocation5 + $0x100] sm:$0xff]
    %v164 = vld [vmem:[#allocation5 + $0x110] sm:$0xff]
    %v165 = vld [vmem:[#allocation5 + $0x120] sm:$0xff]
    %v166 = vld [vmem:[#allocation5 + $0x130] sm:$0xff]
    %v167 = vld [vmem:[#allocation5 + $0xb41] ss:$0 sm:$0xff]
    %168 = vmatprep.subr.mxu0 0.0
    %169 = vmatpush1.msra.mxu0 %v166
    %170 = vmatprep.subr.mxu0 0.0
    %171 = vmatpush1.msra.mxu0 %v165
    %172 = vmatprep.subr.mxu0 0.0
    %173 = vmatpush1.msra.mxu0 %v164
    %174 = vmatprep.subr.mxu0 0.0
    %175 = vmatpush1.msra.mxu0 %v163
    %176 = vmatprep.subr.mxu0 0.0
    %177 = vmatpush1.msra.mxu0 %v162
    %178 = vmatprep.subr.mxu0 0.0
    %179 = vmatpush1.msra.mxu0 %v161
    %180 = vmatprep.subr.mxu0 0.0
    %181 = vmatpush1.msra.mxu0 %v160
    %182 = vmatprep.subr.mxu0 0.0
    %183 = vmatpush1.msra.mxu0 %v159
    %184 = vmatprep.subr.mxu0 0.0
    %185 = vmatpush1.msra.mxu0 %v158
    %186 = vmatprep.subr.mxu0 0.0
    %187 = vmatpush1.msra.mxu0 %v157
    %188 = vmatprep.subr.mxu0 0.0
    %189 = vmatpush1.msra.mxu0 %v156
    %190 = vmatprep.subr.mxu0 0.0
    %191 = vmatpush1.msra.mxu0 %v155
    %192 = vmatprep.subr.mxu0 0.0
    %193 = vmatpush1.msra.mxu0 %v154
    %194 = vmatprep.subr.mxu0 0.0
    %195 = vmatpush1.msra.mxu0 %v153
    %196 = vmatprep.subr.mxu0 0.0
    %197 = vmatpush1.msra.mxu0 %v152
    %198 = vmatprep.subr.mxu0 0.0
    %199 = vmatpush1.msra.mxu0 %v151
    %200 = vmatprep.subr.mxu0 0.0
    %201 = vmatpush2.msra.mxu0 0.0
    %202 = vmatprep.subr.mxu0 0.0
    %203 = vmatpush2.msra.mxu0 0.0
    %204 = vmatprep.subr.mxu0 0.0
    %205 = vmatpush2.msra.mxu0 0.0
    %206 = vmatprep.subr.mxu0 0.0
    %207 = vmatpush2.msra.mxu0 0.0
    %208 = vmatprep.subr.mxu0 0.0
    %209 = vmatpush2.msra.mxu0 0.0
    %210 = vmatprep.subr.mxu0 0.0
    %211 = vmatpush2.msra.mxu0 0.0
    %212 = vmatprep.subr.mxu0 0.0
    %213 = vmatpush2.msra.mxu0 0.0
    %214 = vmatprep.subr.mxu0 0.0
    %215 = vmatpush2.msra.mxu0 0.0
    %216 = vmatprep.subr.mxu0 0.0
    %217 = vmatpush2.msra.mxu0 0.0
    %218 = vmatprep.subr.mxu0 0.0
    %219 = vmatpush2.msra.mxu0 0.0
    %220 = vmatprep.subr.mxu0 0.0
    %221 = vmatpush2.msra.mxu0 0.0
    %222 = vmatprep.subr.mxu0 0.0
    %223 = vmatpush2.msra.mxu0 0.0
    %224 = vmatprep.subr.mxu0 0.0
    %225 = vmatpush2.msra.mxu0 0.0
    %226 = vmatprep.subr.mxu0 0.0
    %227 = vmatpush2.msra.mxu0 0.0
    %228 = vmatprep.subr.mxu0 0.0
    %229 = vmatpush2.msra.mxu0 0.0
    %230 = vmatprep.subr.mxu0 0.0
    %231 = vmatpush2.msra.mxu0 0.0
    %232 = vmatprep.mubr.f32.mxu0 0.0
    %233 = vmatmul.mubr.f32.gmra.mxu0 %v148
    %v234 = vpop.f32.mrf.mxu0
    %v235 = vadd.f32 %v167, %v234
    %v236 = vpop.f32.mrf.mxu0
    %237 = vdwg.mxu0
    %v238 = vld [vmem:[#allocation5 + $0x140] sm:$0xff]
    %v239 = vld [vmem:[#allocation5 + $0x148] sm:$0xff]
    %v240 = vld [vmem:[#allocation5 + $0x150] sm:$0xff]
    %v241 = vld [vmem:[#allocation5 + $0x158] sm:$0xff]
    %v242 = vld [vmem:[#allocation5 + $0x160] sm:$0xff]
    %v243 = vld [vmem:[#allocation5 + $0x168] sm:$0xff]
    %v244 = vld [vmem:[#allocation5 + $0x170] sm:$0xff]
    %v245 = vld [vmem:[#allocation5 + $0x178] sm:$0xff]
    %v246 = vld [vmem:[#allocation5 + $0x180] sm:$0xff]
    %v247 = vld [vmem:[#allocation5 + $0x188] sm:$0xff]
    %v248 = vld [vmem:[#allocation5 + $0x190] sm:$0xff]
    %v249 = vld [vmem:[#allocation5 + $0x198] sm:$0xff]
    %v250 = vld [vmem:[#allocation5 + $0x1a0] sm:$0xff]
    %v251 = vld [vmem:[#allocation5 + $0x1a8] sm:$0xff]
    %v252 = vld [vmem:[#allocation5 + $0x1b0] sm:$0xff]
    %v253 = vld [vmem:[#allocation5 + $0x1b8] sm:$0xff]
    %v254 = vld [vmem:[#allocation5 + $0x1c0] sm:$0xff]
    %v255 = vld [vmem:[#allocation5 + $0x1c8] sm:$0xff]
    %v256 = vld [vmem:[#allocation5 + $0x1d0] sm:$0xff]
    %v257 = vld [vmem:[#allocation5 + $0x1d8] sm:$0xff]
    %v258 = vld [vmem:[#allocation5 + $0x1e0] sm:$0xff]
    %v259 = vld [vmem:[#allocation5 + $0x1e8] sm:$0xff]
    %v260 = vld [vmem:[#allocation5 + $0x1f0] sm:$0xff]
    %v261 = vld [vmem:[#allocation5 + $0x1f8] sm:$0xff]
    %v262 = vld [vmem:[#allocation5 + $0x200] sm:$0xff]
    %v263 = vld [vmem:[#allocation5 + $0x208] sm:$0xff]
    %v264 = vld [vmem:[#allocation5 + $0x210] sm:$0xff]
    %v265 = vld [vmem:[#allocation5 + $0x218] sm:$0xff]
    %v266 = vld [vmem:[#allocation5 + $0x220] sm:$0xff]
    %v267 = vld [vmem:[#allocation5 + $0x228] sm:$0xff]
    %v268 = vld [vmem:[#allocation5 + $0x230] sm:$0xff]
    %v269 = vld [vmem:[#allocation5 + $0x238] sm:$0xff]
    %270 = vmatprep.subr.mxu0 %v269
    %271 = vmatpush1.msra.mxu0 %v268
    %272 = vmatprep.subr.mxu0 %v267
    %273 = vmatpush1.msra.mxu0 %v266
    %274 = vmatprep.subr.mxu0 %v265
    %275 = vmatpush1.msra.mxu0 %v264
    %276 = vmatprep.subr.mxu0 %v263
    %277 = vmatpush1.msra.mxu0 %v262
    %278 = vmatprep.subr.mxu0 %v261
    %279 = vmatpush1.msra.mxu0 %v260
    %280 = vmatprep.subr.mxu0 %v259
    %281 = vmatpush1.msra.mxu0 %v258
    %282 = vmatprep.subr.mxu0 %v257
    %283 = vmatpush1.msra.mxu0 %v256
    %284 = vmatprep.subr.mxu0 %v255
    %285 = vmatpush1.msra.mxu0 %v254
    %286 = vmatprep.subr.mxu0 %v253
    %287 = vmatpush1.msra.mxu0 %v252
    %288 = vmatprep.subr.mxu0 %v251
    %289 = vmatpush1.msra.mxu0 %v250
    %290 = vmatprep.subr.mxu0 %v249
    %291 = vmatpush1.msra.mxu0 %v248
    %292 = vmatprep.subr.mxu0 %v247
    %293 = vmatpush1.msra.mxu0 %v246
    %294 = vmatprep.subr.mxu0 %v245
    %295 = vmatpush1.msra.mxu0 %v244
    %296 = vmatprep.subr.mxu0 %v243
    %297 = vmatpush1.msra.mxu0 %v242
    %298 = vmatprep.subr.mxu0 %v241
    %299 = vmatpush1.msra.mxu0 %v240
    %300 = vmatprep.subr.mxu0 %v239
    %301 = vmatpush1.msra.mxu0 %v238
    %302 = vmatprep.subr.mxu0 0.0
    %303 = vmatpush2.msra.mxu0 0.0
    %304 = vmatprep.subr.mxu0 0.0
    %305 = vmatpush2.msra.mxu0 0.0
    %306 = vmatprep.subr.mxu0 0.0
    %307 = vmatpush2.msra.mxu0 0.0
    %308 = vmatprep.subr.mxu0 0.0
    %309 = vmatpush2.msra.mxu0 0.0
    %310 = vmatprep.subr.mxu0 0.0
    %311 = vmatpush2.msra.mxu0 0.0
    %312 = vmatprep.subr.mxu0 0.0
    %313 = vmatpush2.msra.mxu0 0.0
    %314 = vmatprep.subr.mxu0 0.0
    %315 = vmatpush2.msra.mxu0 0.0
    %316 = vmatprep.subr.mxu0 0.0
    %317 = vmatpush2.msra.mxu0 0.0
    %318 = vmatprep.subr.mxu0 0.0
    %319 = vmatpush2.msra.mxu0 0.0
    %320 = vmatprep.subr.mxu0 0.0
    %321 = vmatpush2.msra.mxu0 0.0
    %322 = vmatprep.subr.mxu0 0.0
    %323 = vmatpush2.msra.mxu0 0.0
    %324 = vmatprep.subr.mxu0 0.0
    %325 = vmatpush2.msra.mxu0 0.0
    %326 = vmatprep.subr.mxu0 0.0
    %327 = vmatpush2.msra.mxu0 0.0
    %328 = vmatprep.subr.mxu0 0.0
    %329 = vmatpush2.msra.mxu0 0.0
    %330 = vmatprep.subr.mxu0 0.0
    %331 = vmatpush2.msra.mxu0 0.0
    %332 = vmatprep.subr.mxu0 0.0
    %333 = vmatpush2.msra.mxu0 0.0
    %334 = vmatprep.mubr.f32.mxu0 0.0
    %335 = vmatmul.mubr.f32.gmra.mxu0 %v235
    %v336 = vpop.f32.mrf.mxu0
    %v337 = vadd.f32 0.0, %v336
    %v338 = vpop.f32.mrf.mxu0
    %v339 = vadd.f32 0.0, %v338
    %340 = vdwg.mxu0
    %v341 = vmul.f32 %v337, 0.5
    %v342 = vmul.f32 %v339, 0.5
    %v343 = vmul.f32 %v337, 0.70710677
    %v344 = vmul.f32 %v339, 0.70710677
    %v345 = vand.u32 2147483647, %v343
    %v346 = vand.u32 2147483647, %v344
    %v347 = vmul.f32 %v345, 0.3275911
    %v348 = vmul.f32 %v346, 0.3275911
    %v349 = vadd.f32 %v347, 1.0
    %v350 = vadd.f32 %v348, 1.0
    %v351 = vrcp.pop %v349
    %v352 = vrcp.pop %v350
    %v353 = vmul.f32 %v351, 1.0614054
    %v354 = vmul.f32 %v352, 1.0614054
    %v355 = vadd.f32 %v353, -1.4531521
    %v356 = vadd.f32 %v354, -1.4531521
    %v357 = vmul.f32 %v355, %v351
    %v358 = vmul.f32 %v356, %v352
    %v359 = vadd.f32 %v357, 1.4214138
    %v360 = vadd.f32 %v358, 1.4214138
    %v361 = vmul.f32 %v359, %v351
    %v362 = vmul.f32 %v360, %v352
    %v363 = vadd.f32 %v361, -0.28449672
    %v364 = vadd.f32 %v362, -0.28449672
    %v365 = vmul.f32 %v363, %v351
    %v366 = vmul.f32 %v364, %v352
    %v367 = vadd.f32 %v365, 0.2548296
    %v368 = vadd.f32 %v366, 0.2548296
    %v369 = vmul.f32 %v367, %v351
    %v370 = vmul.f32 %v368, %v352
    %v371 = vsub.f32 0.0, %v345
    %v372 = vsub.f32 0.0, %v346
    %v373 = vmul.f32 %v371, %v345
    %v374 = vmul.f32 %v372, %v346
    %v375 = vmul.f32 %v373, 1.442695
    %v376 = vpow.pop %v375
    %v377 = vmul.f32 %v374, 1.442695
    %v378 = vpow.pop %v377
    %v379 = vmul.f32 %v369, %v376
    %v380 = vmul.f32 %v370, %v378
    %v381 = vsub.f32 1.0, %v379
    %v382 = vsub.f32 1.0, %v380
    %vm383 = vcmp.lt.f32.partialorder %v343, 0.0
    %vm384 = vcmp.lt.f32.partialorder %v344, 0.0
    %v385 = vsub.f32 0.0, %v381
    %v386 = vsub.f32 0.0, %v382
    %v387 = vsel %vm383, %v385, %v381
    %v388 = vsel %vm384, %v386, %v382
    %v389 = vadd.f32 %v387, 1.0
    %v390 = vadd.f32 %v388, 1.0
    %v391 = vmul.f32 %v341, %v389
    %v392 = vmul.f32 %v342, %v390
    %v393 = vld [vmem:[#allocation5 + $0x240] sm:$0xff]
    %v394 = vld [vmem:[#allocation5 + $0x250] sm:$0xff]
    %v395 = vld [vmem:[#allocation5 + $0x260] sm:$0xff]
    %v396 = vld [vmem:[#allocation5 + $0x270] sm:$0xff]
    %v397 = vld [vmem:[#allocation5 + $0x280] sm:$0xff]
    %v398 = vld [vmem:[#allocation5 + $0x290] sm:$0xff]
    %v399 = vld [vmem:[#allocation5 + $0x2a0] sm:$0xff]
    %v400 = vld [vmem:[#allocation5 + $0x2b0] sm:$0xff]
    %v401 = vld [vmem:[#allocation5 + $0x2c0] sm:$0xff]
    %v402 = vld [vmem:[#allocation5 + $0x2d0] sm:$0xff]
    %v403 = vld [vmem:[#allocation5 + $0x2e0] sm:$0xff]
    %v404 = vld [vmem:[#allocation5 + $0x2f0] sm:$0xff]
    %v405 = vld [vmem:[#allocation5 + $0x300] sm:$0xff]
    %v406 = vld [vmem:[#allocation5 + $0x310] sm:$0xff]
    %v407 = vld [vmem:[#allocation5 + $0x320] sm:$0xff]
    %v408 = vld [vmem:[#allocation5 + $0x330] sm:$0xff]
    %v409 = vld [vmem:[#allocation5 + $0x340] sm:$0xff]
    %v410 = vld [vmem:[#allocation5 + $0x350] sm:$0xff]
    %v411 = vld [vmem:[#allocation5 + $0x360] sm:$0xff]
    %v412 = vld [vmem:[#allocation5 + $0x370] sm:$0xff]
    %v413 = vld [vmem:[#allocation5 + $0x380] sm:$0xff]
    %v414 = vld [vmem:[#allocation5 + $0x390] sm:$0xff]
    %v415 = vld [vmem:[#allocation5 + $0x3a0] sm:$0xff]
    %v416 = vld [vmem:[#allocation5 + $0x3b0] sm:$0xff]
    %v417 = vld [vmem:[#allocation5 + $0x3c0] sm:$0xff]
    %v418 = vld [vmem:[#allocation5 + $0x3d0] sm:$0xff]
    %v419 = vld [vmem:[#allocation5 + $0x3e0] sm:$0xff]
    %v420 = vld [vmem:[#allocation5 + $0x3f0] sm:$0xff]
    %v421 = vld [vmem:[#allocation5 + $0x400] sm:$0xff]
    %v422 = vld [vmem:[#allocation5 + $0x410] sm:$0xff]
    %v423 = vld [vmem:[#allocation5 + $0x420] sm:$0xff]
    %v424 = vld [vmem:[#allocation5 + $0x430] sm:$0xff]
    %425 = vmatprep.subr.mxu0 0.0
    %426 = vmatpush1.msra.mxu0 %v408
    %427 = vmatprep.subr.mxu0 0.0
    %428 = vmatpush1.msra.mxu0 %v407
    %429 = vmatprep.subr.mxu0 0.0
    %430 = vmatpush1.msra.mxu0 %v406
    %431 = vmatprep.subr.mxu0 0.0
    %432 = vmatpush1.msra.mxu0 %v405
    %433 = vmatprep.subr.mxu0 0.0
    %434 = vmatpush1.msra.mxu0 %v404
    %435 = vmatprep.subr.mxu0 0.0
    %436 = vmatpush1.msra.mxu0 %v403
    %437 = vmatprep.subr.mxu0 0.0
    %438 = vmatpush1.msra.mxu0 %v402
    %439 = vmatprep.subr.mxu0 0.0
    %440 = vmatpush1.msra.mxu0 %v401
    %441 = vmatprep.subr.mxu0 0.0
    %442 = vmatpush1.msra.mxu0 %v400
    %443 = vmatprep.subr.mxu0 0.0
    %444 = vmatpush1.msra.mxu0 %v399
    %445 = vmatprep.subr.mxu0 0.0
    %446 = vmatpush1.msra.mxu0 %v398
    %447 = vmatprep.subr.mxu0 0.0
    %448 = vmatpush1.msra.mxu0 %v397
    %449 = vmatprep.subr.mxu0 0.0
    %450 = vmatpush1.msra.mxu0 %v396
    %451 = vmatprep.subr.mxu0 0.0
    %452 = vmatpush1.msra.mxu0 %v395
    %453 = vmatprep.subr.mxu0 0.0
    %454 = vmatpush1.msra.mxu0 %v394
    %455 = vmatprep.subr.mxu0 0.0
    %456 = vmatpush1.msra.mxu0 %v393
    %457 = vmatprep.subr.mxu0 0.0
    %458 = vmatpush2.msra.mxu0 %v424
    %459 = vmatprep.subr.mxu0 0.0
    %460 = vmatpush2.msra.mxu0 %v423
    %461 = vmatprep.subr.mxu0 0.0
    %462 = vmatpush2.msra.mxu0 %v422
    %463 = vmatprep.subr.mxu0 0.0
    %464 = vmatpush2.msra.mxu0 %v421
    %465 = vmatprep.subr.mxu0 0.0
    %466 = vmatpush2.msra.mxu0 %v420
    %467 = vmatprep.subr.mxu0 0.0
    %468 = vmatpush2.msra.mxu0 %v419
    %469 = vmatprep.subr.mxu0 0.0
    %470 = vmatpush2.msra.mxu0 %v418
    %471 = vmatprep.subr.mxu0 0.0
    %472 = vmatpush2.msra.mxu0 %v417
    %473 = vmatprep.subr.mxu0 0.0
    %474 = vmatpush2.msra.mxu0 %v416
    %475 = vmatprep.subr.mxu0 0.0
    %476 = vmatpush2.msra.mxu0 %v415
    %477 = vmatprep.subr.mxu0 0.0
    %478 = vmatpush2.msra.mxu0 %v414
    %479 = vmatprep.subr.mxu0 0.0
    %480 = vmatpush2.msra.mxu0 %v413
    %481 = vmatprep.subr.mxu0 0.0
    %482 = vmatpush2.msra.mxu0 %v412
    %483 = vmatprep.subr.mxu0 0.0
    %484 = vmatpush2.msra.mxu0 %v411
    %485 = vmatprep.subr.mxu0 0.0
    %486 = vmatpush2.msra.mxu0 %v410
    %487 = vmatprep.subr.mxu0 0.0
    %488 = vmatpush2.msra.mxu0 %v409
    %489 = vmatprep.mubr.f32.mxu0 %v392
    %490 = vmatmul.mubr.f32.gmra.mxu0 %v391
    %v491 = vpop.f32.mrf.mxu0
    %v492 = vadd.f32 0.0, %v491
    %v493 = vpop.f32.mrf.mxu0
    %494 = vdwg.mxu0
    %v495 = vadd.f32 %v235, %v492
    %v496 = vld [vmem:[#allocation5 + $0x840] sm:$0xff]
    %v497 = vld [vmem:[#allocation5 + $0x850] sm:$0xff]
    %v498 = vld [vmem:[#allocation5 + $0x860] sm:$0xff]
    %v499 = vld [vmem:[#allocation5 + $0x870] sm:$0xff]
    %v500 = vld [vmem:[#allocation5 + $0x880] sm:$0xff]
    %v501 = vld [vmem:[#allocation5 + $0x890] sm:$0xff]
    %v502 = vld [vmem:[#allocation5 + $0x8a0] sm:$0xff]
    %v503 = vld [vmem:[#allocation5 + $0x8b0] sm:$0xff]
    %v504 = vld [vmem:[#allocation5 + $0x8c0] sm:$0xff]
    %v505 = vld [vmem:[#allocation5 + $0x8d0] sm:$0xff]
    %v506 = vld [vmem:[#allocation5 + $0x8e0] sm:$0xff]
    %v507 = vld [vmem:[#allocation5 + $0x8f0] sm:$0xff]
    %v508 = vld [vmem:[#allocation5 + $0x900] sm:$0xff]
    %v509 = vld [vmem:[#allocation5 + $0x910] sm:$0xff]
    %v510 = vld [vmem:[#allocation5 + $0x920] sm:$0xff]
    %v511 = vld [vmem:[#allocation5 + $0x930] sm:$0xff]
    %512 = vmatprep.subr.mxu0 0.0
    %513 = vmatpush1.msra.mxu0 %v511
    %514 = vmatprep.subr.mxu0 0.0
    %515 = vmatpush1.msra.mxu0 %v510
    %516 = vmatprep.subr.mxu0 0.0
    %517 = vmatpush1.msra.mxu0 %v509
    %518 = vmatprep.subr.mxu0 0.0
    %519 = vmatpush1.msra.mxu0 %v508
    %520 = vmatprep.subr.mxu0 0.0
    %521 = vmatpush1.msra.mxu0 %v507
    %522 = vmatprep.subr.mxu0 0.0
    %523 = vmatpush1.msra.mxu0 %v506
    %524 = vmatprep.subr.mxu0 0.0
    %525 = vmatpush1.msra.mxu0 %v505
    %526 = vmatprep.subr.mxu0 0.0
    %527 = vmatpush1.msra.mxu0 %v504
    %528 = vmatprep.subr.mxu0 0.0
    %529 = vmatpush1.msra.mxu0 %v503
    %530 = vmatprep.subr.mxu0 0.0
    %531 = vmatpush1.msra.mxu0 %v502
    %532 = vmatprep.subr.mxu0 0.0
    %533 = vmatpush1.msra.mxu0 %v501
    %534 = vmatprep.subr.mxu0 0.0
    %535 = vmatpush1.msra.mxu0 %v500
    %536 = vmatprep.subr.mxu0 0.0
    %537 = vmatpush1.msra.mxu0 %v499
    %538 = vmatprep.subr.mxu0 0.0
    %539 = vmatpush1.msra.mxu0 %v498
    %540 = vmatprep.subr.mxu0 0.0
    %541 = vmatpush1.msra.mxu0 %v497
    %542 = vmatprep.subr.mxu0 0.0
    %543 = vmatpush1.msra.mxu0 %v496
    %544 = vmatprep.subr.mxu0 0.0
    %545 = vmatpush2.msra.mxu0 0.0
    %546 = vmatprep.subr.mxu0 0.0
    %547 = vmatpush2.msra.mxu0 0.0
    %548 = vmatprep.subr.mxu0 0.0
    %549 = vmatpush2.msra.mxu0 0.0
    %550 = vmatprep.subr.mxu0 0.0
    %551 = vmatpush2.msra.mxu0 0.0
    %552 = vmatprep.subr.mxu0 0.0
    %553 = vmatpush2.msra.mxu0 0.0
    %554 = vmatprep.subr.mxu0 0.0
    %555 = vmatpush2.msra.mxu0 0.0
    %556 = vmatprep.subr.mxu0 0.0
    %557 = vmatpush2.msra.mxu0 0.0
    %558 = vmatprep.subr.mxu0 0.0
    %559 = vmatpush2.msra.mxu0 0.0
    %560 = vmatprep.subr.mxu0 0.0
    %561 = vmatpush2.msra.mxu0 0.0
    %562 = vmatprep.subr.mxu0 0.0
    %563 = vmatpush2.msra.mxu0 0.0
    %564 = vmatprep.subr.mxu0 0.0
    %565 = vmatpush2.msra.mxu0 0.0
    %566 = vmatprep.subr.mxu0 0.0
    %567 = vmatpush2.msra.mxu0 0.0
    %568 = vmatprep.subr.mxu0 0.0
    %569 = vmatpush2.msra.mxu0 0.0
    %570 = vmatprep.subr.mxu0 0.0
    %571 = vmatpush2.msra.mxu0 0.0
    %572 = vmatprep.subr.mxu0 0.0
    %573 = vmatpush2.msra.mxu0 0.0
    %574 = vmatprep.subr.mxu0 0.0
    %575 = vmatpush2.msra.mxu0 0.0
    %576 = vmatprep.mubr.f32.mxu0 0.0
    %577 = vmatmul.mubr.f32.gmra.mxu0 %v495
    %v578 = vpop.f32.mrf.mxu0
    %v579 = vadd.f32 0.0, %v578
    %v580 = vpop.f32.mrf.mxu0
    %581 = vdwg.mxu0
    %v582 = vld [vmem:[#allocation5 + $0x440] sm:$0xff]
    %v583 = vld [vmem:[#allocation5 + $0x450] sm:$0xff]
    %v584 = vld [vmem:[#allocation5 + $0x460] sm:$0xff]
    %v585 = vld [vmem:[#allocation5 + $0x470] sm:$0xff]
    %v586 = vld [vmem:[#allocation5 + $0x480] sm:$0xff]
    %v587 = vld [vmem:[#allocation5 + $0x490] sm:$0xff]
    %v588 = vld [vmem:[#allocation5 + $0x4a0] sm:$0xff]
    %v589 = vld [vmem:[#allocation5 + $0x4b0] sm:$0xff]
    %v590 = vld [vmem:[#allocation5 + $0x4c0] sm:$0xff]
    %v591 = vld [vmem:[#allocation5 + $0x4d0] sm:$0xff]
    %v592 = vld [vmem:[#allocation5 + $0x4e0] sm:$0xff]
    %v593 = vld [vmem:[#allocation5 + $0x4f0] sm:$0xff]
    %v594 = vld [vmem:[#allocation5 + $0x500] sm:$0xff]
    %v595 = vld [vmem:[#allocation5 + $0x510] sm:$0xff]
    %v596 = vld [vmem:[#allocation5 + $0x520] sm:$0xff]
    %v597 = vld [vmem:[#allocation5 + $0x530] sm:$0xff]
    %v598 = vld [vmem:[#allocation5 + $0xb42] ss:$0 sm:$0xff]
    %599 = vmatprep.subr.mxu0 0.0
    %600 = vmatpush1.msra.mxu0 %v597
    %601 = vmatprep.subr.mxu0 0.0
    %602 = vmatpush1.msra.mxu0 %v596
    %603 = vmatprep.subr.mxu0 0.0
    %604 = vmatpush1.msra.mxu0 %v595
    %605 = vmatprep.subr.mxu0 0.0
    %606 = vmatpush1.msra.mxu0 %v594
    %607 = vmatprep.subr.mxu0 0.0
    %608 = vmatpush1.msra.mxu0 %v593
    %609 = vmatprep.subr.mxu0 0.0
    %610 = vmatpush1.msra.mxu0 %v592
    %611 = vmatprep.subr.mxu0 0.0
    %612 = vmatpush1.msra.mxu0 %v591
    %613 = vmatprep.subr.mxu0 0.0
    %614 = vmatpush1.msra.mxu0 %v590
    %615 = vmatprep.subr.mxu0 0.0
    %616 = vmatpush1.msra.mxu0 %v589
    %617 = vmatprep.subr.mxu0 0.0
    %618 = vmatpush1.msra.mxu0 %v588
    %619 = vmatprep.subr.mxu0 0.0
    %620 = vmatpush1.msra.mxu0 %v587
    %621 = vmatprep.subr.mxu0 0.0
    %622 = vmatpush1.msra.mxu0 %v586
    %623 = vmatprep.subr.mxu0 0.0
    %624 = vmatpush1.msra.mxu0 %v585
    %625 = vmatprep.subr.mxu0 0.0
    %626 = vmatpush1.msra.mxu0 %v584
    %627 = vmatprep.subr.mxu0 0.0
    %628 = vmatpush1.msra.mxu0 %v583
    %629 = vmatprep.subr.mxu0 0.0
    %630 = vmatpush1.msra.mxu0 %v582
    %631 = vmatprep.subr.mxu0 0.0
    %632 = vmatpush2.msra.mxu0 0.0
    %633 = vmatprep.subr.mxu0 0.0
    %634 = vmatpush2.msra.mxu0 0.0
    %635 = vmatprep.subr.mxu0 0.0
    %636 = vmatpush2.msra.mxu0 0.0
    %637 = vmatprep.subr.mxu0 0.0
    %638 = vmatpush2.msra.mxu0 0.0
    %639 = vmatprep.subr.mxu0 0.0
    %640 = vmatpush2.msra.mxu0 0.0
    %641 = vmatprep.subr.mxu0 0.0
    %642 = vmatpush2.msra.mxu0 0.0
    %643 = vmatprep.subr.mxu0 0.0
    %644 = vmatpush2.msra.mxu0 0.0
    %645 = vmatprep.subr.mxu0 0.0
    %646 = vmatpush2.msra.mxu0 0.0
    %647 = vmatprep.subr.mxu0 0.0
    %648 = vmatpush2.msra.mxu0 0.0
    %649 = vmatprep.subr.mxu0 0.0
    %650 = vmatpush2.msra.mxu0 0.0
    %651 = vmatprep.subr.mxu0 0.0
    %652 = vmatpush2.msra.mxu0 0.0
    %653 = vmatprep.subr.mxu0 0.0
    %654 = vmatpush2.msra.mxu0 0.0
    %655 = vmatprep.subr.mxu0 0.0
    %656 = vmatpush2.msra.mxu0 0.0
    %657 = vmatprep.subr.mxu0 0.0
    %658 = vmatpush2.msra.mxu0 0.0
    %659 = vmatprep.subr.mxu0 0.0
    %660 = vmatpush2.msra.mxu0 0.0
    %661 = vmatprep.subr.mxu0 0.0
    %662 = vmatpush2.msra.mxu0 0.0
    %663 = vmatprep.mubr.f32.mxu0 0.0
    %664 = vmatmul.mubr.f32.gmra.mxu0 %v579
    %v665 = vpop.f32.mrf.mxu0
    %v666 = vadd.f32 %v598, %v665
    %v667 = vpop.f32.mrf.mxu0
    %668 = vdwg.mxu0
    %v669 = vld [vmem:[#allocation5 + $0x540] sm:$0xff]
    %v670 = vld [vmem:[#allocation5 + $0x548] sm:$0xff]
    %v671 = vld [vmem:[#allocation5 + $0x550] sm:$0xff]
    %v672 = vld [vmem:[#allocation5 + $0x558] sm:$0xff]
    %v673 = vld [vmem:[#allocation5 + $0x560] sm:$0xff]
    %v674 = vld [vmem:[#allocation5 + $0x568] sm:$0xff]
    %v675 = vld [vmem:[#allocation5 + $0x570] sm:$0xff]
    %v676 = vld [vmem:[#allocation5 + $0x578] sm:$0xff]
    %v677 = vld [vmem:[#allocation5 + $0x580] sm:$0xff]
    %v678 = vld [vmem:[#allocation5 + $0x588] sm:$0xff]
    %v679 = vld [vmem:[#allocation5 + $0x590] sm:$0xff]
    %v680 = vld [vmem:[#allocation5 + $0x598] sm:$0xff]
    %v681 = vld [vmem:[#allocation5 + $0x5a0] sm:$0xff]
    %v682 = vld [vmem:[#allocation5 + $0x5a8] sm:$0xff]
    %v683 = vld [vmem:[#allocation5 + $0x5b0] sm:$0xff]
    %v684 = vld [vmem:[#allocation5 + $0x5b8] sm:$0xff]
    %v685 = vld [vmem:[#allocation5 + $0x5c0] sm:$0xff]
    %v686 = vld [vmem:[#allocation5 + $0x5c8] sm:$0xff]
    %v687 = vld [vmem:[#allocation5 + $0x5d0] sm:$0xff]
    %v688 = vld [vmem:[#allocation5 + $0x5d8] sm:$0xff]
    %v689 = vld [vmem:[#allocation5 + $0x5e0] sm:$0xff]
    %v690 = vld [vmem:[#allocation5 + $0x5e8] sm:$0xff]
    %v691 = vld [vmem:[#allocation5 + $0x5f0] sm:$0xff]
    %v692 = vld [vmem:[#allocation5 + $0x5f8] sm:$0xff]
    %v693 = vld [vmem:[#allocation5 + $0x600] sm:$0xff]
    %v694 = vld [vmem:[#allocation5 + $0x608] sm:$0xff]
    %v695 = vld [vmem:[#allocation5 + $0x610] sm:$0xff]
    %v696 = vld [vmem:[#allocation5 + $0x618] sm:$0xff]
    %v697 = vld [vmem:[#allocation5 + $0x620] sm:$0xff]
    %v698 = vld [vmem:[#allocation5 + $0x628] sm:$0xff]
    %v699 = vld [vmem:[#allocation5 + $0x630] sm:$0xff]
    %v700 = vld [vmem:[#allocation5 + $0x638] sm:$0xff]
    %701 = vmatprep.subr.mxu0 %v700
    %702 = vmatpush1.msra.mxu0 %v699
    %703 = vmatprep.subr.mxu0 %v698
    %704 = vmatpush1.msra.mxu0 %v697
    %705 = vmatprep.subr.mxu0 %v696
    %706 = vmatpush1.msra.mxu0 %v695
    %707 = vmatprep.subr.mxu0 %v694
    %708 = vmatpush1.msra.mxu0 %v693
    %709 = vmatprep.subr.mxu0 %v692
    %710 = vmatpush1.msra.mxu0 %v691
    %711 = vmatprep.subr.mxu0 %v690
    %712 = vmatpush1.msra.mxu0 %v689
    %713 = vmatprep.subr.mxu0 %v688
    %714 = vmatpush1.msra.mxu0 %v687
    %715 = vmatprep.subr.mxu0 %v686
    %716 = vmatpush1.msra.mxu0 %v685
    %717 = vmatprep.subr.mxu0 %v684
    %718 = vmatpush1.msra.mxu0 %v683
    %719 = vmatprep.subr.mxu0 %v682
    %720 = vmatpush1.msra.mxu0 %v681
    %721 = vmatprep.subr.mxu0 %v680
    %722 = vmatpush1.msra.mxu0 %v679
    %723 = vmatprep.subr.mxu0 %v678
    %724 = vmatpush1.msra.mxu0 %v677
    %725 = vmatprep.subr.mxu0 %v676
    %726 = vmatpush1.msra.mxu0 %v675
    %727 = vmatprep.subr.mxu0 %v674
    %728 = vmatpush1.msra.mxu0 %v673
    %729 = vmatprep.subr.mxu0 %v672
    %730 = vmatpush1.msra.mxu0 %v671
    %731 = vmatprep.subr.mxu0 %v670
    %732 = vmatpush1.msra.mxu0 %v669
    %733 = vmatprep.subr.mxu0 0.0
    %734 = vmatpush2.msra.mxu0 0.0
    %735 = vmatprep.subr.mxu0 0.0
    %736 = vmatpush2.msra.mxu0 0.0
    %737 = vmatprep.subr.mxu0 0.0
    %738 = vmatpush2.msra.mxu0 0.0
    %739 = vmatprep.subr.mxu0 0.0
    %740 = vmatpush2.msra.mxu0 0.0
    %741 = vmatprep.subr.mxu0 0.0
    %742 = vmatpush2.msra.mxu0 0.0
    %743 = vmatprep.subr.mxu0 0.0
    %744 = vmatpush2.msra.mxu0 0.0
    %745 = vmatprep.subr.mxu0 0.0
    %746 = vmatpush2.msra.mxu0 0.0
    %747 = vmatprep.subr.mxu0 0.0
    %748 = vmatpush2.msra.mxu0 0.0
    %749 = vmatprep.subr.mxu0 0.0
    %750 = vmatpush2.msra.mxu0 0.0
    %751 = vmatprep.subr.mxu0 0.0
    %752 = vmatpush2.msra.mxu0 0.0
    %753 = vmatprep.subr.mxu0 0.0
    %754 = vmatpush2.msra.mxu0 0.0
    %755 = vmatprep.subr.mxu0 0.0
    %756 = vmatpush2.msra.mxu0 0.0
    %757 = vmatprep.subr.mxu0 0.0
    %758 = vmatpush2.msra.mxu0 0.0
    %759 = vmatprep.subr.mxu0 0.0
    %760 = vmatpush2.msra.mxu0 0.0
    %761 = vmatprep.subr.mxu0 0.0
    %762 = vmatpush2.msra.mxu0 0.0
    %763 = vmatprep.subr.mxu0 0.0
    %764 = vmatpush2.msra.mxu0 0.0
    %765 = vmatprep.mubr.f32.mxu0 0.0
    %766 = vmatmul.mubr.f32.gmra.mxu0 %v666
    %v767 = vpop.f32.mrf.mxu0
    %v768 = vadd.f32 0.0, %v767
    %v769 = vpop.f32.mrf.mxu0
    %v770 = vadd.f32 0.0, %v769
    %771 = vdwg.mxu0
    %v772 = vmul.f32 %v768, 0.5
    %v773 = vmul.f32 %v770, 0.5
    %v774 = vmul.f32 %v768, 0.70710677
    %v775 = vmul.f32 %v770, 0.70710677
    %v776 = vand.u32 2147483647, %v774
    %v777 = vand.u32 2147483647, %v775
    %v778 = vmul.f32 %v776, 0.3275911
    %v779 = vmul.f32 %v777, 0.3275911
    %v780 = vadd.f32 %v778, 1.0
    %v781 = vadd.f32 %v779, 1.0
    %v782 = vrcp.pop %v780
    %v783 = vrcp.pop %v781
    %v784 = vmul.f32 %v782, 1.0614054
    %v785 = vmul.f32 %v783, 1.0614054
    %v786 = vadd.f32 %v784, -1.4531521
    %v787 = vadd.f32 %v785, -1.4531521
    %v788 = vmul.f32 %v786, %v782
    %v789 = vmul.f32 %v787, %v783
    %v790 = vadd.f32 %v788, 1.4214138
    %v791 = vadd.f32 %v789, 1.4214138
    %v792 = vmul.f32 %v790, %v782
    %v793 = vmul.f32 %v791, %v783
    %v794 = vadd.f32 %v792, -0.28449672
    %v795 = vadd.f32 %v793, -0.28449672
    %v796 = vmul.f32 %v794, %v782
    %v797 = vmul.f32 %v795, %v783
    %v798 = vadd.f32 %v796, 0.2548296
    %v799 = vadd.f32 %v797, 0.2548296
    %v800 = vmul.f32 %v798, %v782
    %v801 = vmul.f32 %v799, %v783
    %v802 = vsub.f32 0.0, %v776
    %v803 = vsub.f32 0.0, %v777
    %v804 = vmul.f32 %v802, %v776
    %v805 = vmul.f32 %v803, %v777
    %v806 = vmul.f32 %v804, 1.442695
    %v807 = vpow.pop %v806
    %v808 = vmul.f32 %v805, 1.442695
    %v809 = vpow.pop %v808
    %v810 = vmul.f32 %v800, %v807
    %v811 = vmul.f32 %v801, %v809
    %v812 = vsub.f32 1.0, %v810
    %v813 = vsub.f32 1.0, %v811
    %vm814 = vcmp.lt.f32.partialorder %v774, 0.0
    %vm815 = vcmp.lt.f32.partialorder %v775, 0.0
    %v816 = vsub.f32 0.0, %v812
    %v817 = vsub.f32 0.0, %v813
    %v818 = vsel %vm814, %v816, %v812
    %v819 = vsel %vm815, %v817, %v813
    %v820 = vadd.f32 %v818, 1.0
    %v821 = vadd.f32 %v819, 1.0
    %v822 = vmul.f32 %v772, %v820
    %v823 = vmul.f32 %v773, %v821
    %v824 = vld [vmem:[#allocation5 + $0x640] sm:$0xff]
    %v825 = vld [vmem:[#allocation5 + $0x650] sm:$0xff]
    %v826 = vld [vmem:[#allocation5 + $0x660] sm:$0xff]
    %v827 = vld [vmem:[#allocation5 + $0x670] sm:$0xff]
    %v828 = vld [vmem:[#allocation5 + $0x680] sm:$0xff]
    %v829 = vld [vmem:[#allocation5 + $0x690] sm:$0xff]
    %v830 = vld [vmem:[#allocation5 + $0x6a0] sm:$0xff]
    %v831 = vld [vmem:[#allocation5 + $0x6b0] sm:$0xff]
    %v832 = vld [vmem:[#allocation5 + $0x6c0] sm:$0xff]
    %v833 = vld [vmem:[#allocation5 + $0x6d0] sm:$0xff]
    %v834 = vld [vmem:[#allocation5 + $0x6e0] sm:$0xff]
    %v835 = vld [vmem:[#allocation5 + $0x6f0] sm:$0xff]
    %v836 = vld [vmem:[#allocation5 + $0x700] sm:$0xff]
    %v837 = vld [vmem:[#allocation5 + $0x710] sm:$0xff]
    %v838 = vld [vmem:[#allocation5 + $0x720] sm:$0xff]
    %v839 = vld [vmem:[#allocation5 + $0x730] sm:$0xff]
    %v840 = vld [vmem:[#allocation5 + $0x740] sm:$0xff]
    %v841 = vld [vmem:[#allocation5 + $0x750] sm:$0xff]
    %v842 = vld [vmem:[#allocation5 + $0x760] sm:$0xff]
    %v843 = vld [vmem:[#allocation5 + $0x770] sm:$0xff]
    %v844 = vld [vmem:[#allocation5 + $0x780] sm:$0xff]
    %v845 = vld [vmem:[#allocation5 + $0x790] sm:$0xff]
    %v846 = vld [vmem:[#allocation5 + $0x7a0] sm:$0xff]
    %v847 = vld [vmem:[#allocation5 + $0x7b0] sm:$0xff]
    %v848 = vld [vmem:[#allocation5 + $0x7c0] sm:$0xff]
    %v849 = vld [vmem:[#allocation5 + $0x7d0] sm:$0xff]
    %v850 = vld [vmem:[#allocation5 + $0x7e0] sm:$0xff]
    %v851 = vld [vmem:[#allocation5 + $0x7f0] sm:$0xff]
    %v852 = vld [vmem:[#allocation5 + $0x800] sm:$0xff]
    %v853 = vld [vmem:[#allocation5 + $0x810] sm:$0xff]
    %v854 = vld [vmem:[#allocation5 + $0x820] sm:$0xff]
    %v855 = vld [vmem:[#allocation5 + $0x830] sm:$0xff]
    %856 = vmatprep.subr.mxu0 0.0
    %857 = vmatpush1.msra.mxu0 %v839
    %858 = vmatprep.subr.mxu0 0.0
    %859 = vmatpush1.msra.mxu0 %v838
    %860 = vmatprep.subr.mxu0 0.0
    %861 = vmatpush1.msra.mxu0 %v837
    %862 = vmatprep.subr.mxu0 0.0
    %863 = vmatpush1.msra.mxu0 %v836
    %864 = vmatprep.subr.mxu0 0.0
    %865 = vmatpush1.msra.mxu0 %v835
    %866 = vmatprep.subr.mxu0 0.0
    %867 = vmatpush1.msra.mxu0 %v834
    %868 = vmatprep.subr.mxu0 0.0
    %869 = vmatpush1.msra.mxu0 %v833
    %870 = vmatprep.subr.mxu0 0.0
    %871 = vmatpush1.msra.mxu0 %v832
    %872 = vmatprep.subr.mxu0 0.0
    %873 = vmatpush1.msra.mxu0 %v831
    %874 = vmatprep.subr.mxu0 0.0
    %875 = vmatpush1.msra.mxu0 %v830
    %876 = vmatprep.subr.mxu0 0.0
    %877 = vmatpush1.msra.mxu0 %v829
    %878 = vmatprep.subr.mxu0 0.0
    %879 = vmatpush1.msra.mxu0 %v828
    %880 = vmatprep.subr.mxu0 0.0
    %881 = vmatpush1.msra.mxu0 %v827
    %882 = vmatprep.subr.mxu0 0.0
    %883 = vmatpush1.msra.mxu0 %v826
    %884 = vmatprep.subr.mxu0 0.0
    %885 = vmatpush1.msra.mxu0 %v825
    %886 = vmatprep.subr.mxu0 0.0
    %887 = vmatpush1.msra.mxu0 %v824
    %888 = vmatprep.subr.mxu0 0.0
    %889 = vmatpush2.msra.mxu0 %v855
    %890 = vmatprep.subr.mxu0 0.0
    %891 = vmatpush2.msra.mxu0 %v854
    %892 = vmatprep.subr.mxu0 0.0
    %893 = vmatpush2.msra.mxu0 %v853
    %894 = vmatprep.subr.mxu0 0.0
    %895 = vmatpush2.msra.mxu0 %v852
    %896 = vmatprep.subr.mxu0 0.0
    %897 = vmatpush2.msra.mxu0 %v851
    %898 = vmatprep.subr.mxu0 0.0
    %899 = vmatpush2.msra.mxu0 %v850
    %900 = vmatprep.subr.mxu0 0.0
    %901 = vmatpush2.msra.mxu0 %v849
    %902 = vmatprep.subr.mxu0 0.0
    %903 = vmatpush2.msra.mxu0 %v848
    %904 = vmatprep.subr.mxu0 0.0
    %905 = vmatpush2.msra.mxu0 %v847
    %906 = vmatprep.subr.mxu0 0.0
    %907 = vmatpush2.msra.mxu0 %v846
    %908 = vmatprep.subr.mxu0 0.0
    %909 = vmatpush2.msra.mxu0 %v845
    %910 = vmatprep.subr.mxu0 0.0
    %911 = vmatpush2.msra.mxu0 %v844
    %912 = vmatprep.subr.mxu0 0.0
    %913 = vmatpush2.msra.mxu0 %v843
    %914 = vmatprep.subr.mxu0 0.0
    %915 = vmatpush2.msra.mxu0 %v842
    %916 = vmatprep.subr.mxu0 0.0
    %917 = vmatpush2.msra.mxu0 %v841
    %918 = vmatprep.subr.mxu0 0.0
    %919 = vmatpush2.msra.mxu0 %v840
    %920 = vmatprep.mubr.f32.mxu0 %v823
    %921 = vmatmul.mubr.f32.gmra.mxu0 %v822
    %v922 = vpop.f32.mrf.mxu0
    %v923 = vadd.f32 0.0, %v922
    %v924 = vpop.f32.mrf.mxu0
    %925 = vdwg.mxu0
    %v926 = vadd.f32 %v666, %v923
    %927 = vmatprep.subr.mxu0 0.0
    %928 = vmatpush1.msra.mxu0 %v511
    %929 = vmatprep.subr.mxu0 0.0
    %930 = vmatpush1.msra.mxu0 %v510
    %931 = vmatprep.subr.mxu0 0.0
    %932 = vmatpush1.msra.mxu0 %v509
    %933 = vmatprep.subr.mxu0 0.0
    %934 = vmatpush1.msra.mxu0 %v508
    %935 = vmatprep.subr.mxu0 0.0
    %936 = vmatpush1.msra.mxu0 %v507
    %937 = vmatprep.subr.mxu0 0.0
    %938 = vmatpush1.msra.mxu0 %v506
    %939 = vmatprep.subr.mxu0 0.0
    %940 = vmatpush1.msra.mxu0 %v505
    %941 = vmatprep.subr.mxu0 0.0
    %942 = vmatpush1.msra.mxu0 %v504
    %943 = vmatprep.subr.mxu0 0.0
    %944 = vmatpush1.msra.mxu0 %v503
    %945 = vmatprep.subr.mxu0 0.0
    %946 = vmatpush1.msra.mxu0 %v502
    %947 = vmatprep.subr.mxu0 0.0
    %948 = vmatpush1.msra.mxu0 %v501
    %949 = vmatprep.subr.mxu0 0.0
    %950 = vmatpush1.msra.mxu0 %v500
    %951 = vmatprep.subr.mxu0 0.0
    %952 = vmatpush1.msra.mxu0 %v499
    %953 = vmatprep.subr.mxu0 0.0
    %954 = vmatpush1.msra.mxu0 %v498
    %955 = vmatprep.subr.mxu0 0.0
    %956 = vmatpush1.msra.mxu0 %v497
    %957 = vmatprep.subr.mxu0 0.0
    %958 = vmatpush1.msra.mxu0 %v496
    %959 = vmatprep.subr.mxu0 0.0
    %960 = vmatpush2.msra.mxu0 0.0
    %961 = vmatprep.subr.mxu0 0.0
    %962 = vmatpush2.msra.mxu0 0.0
    %963 = vmatprep.subr.mxu0 0.0
    %964 = vmatpush2.msra.mxu0 0.0
    %965 = vmatprep.subr.mxu0 0.0
    %966 = vmatpush2.msra.mxu0 0.0
    %967 = vmatprep.subr.mxu0 0.0
    %968 = vmatpush2.msra.mxu0 0.0
    %969 = vmatprep.subr.mxu0 0.0
    %970 = vmatpush2.msra.mxu0 0.0
    %971 = vmatprep.subr.mxu0 0.0
    %972 = vmatpush2.msra.mxu0 0.0
    %973 = vmatprep.subr.mxu0 0.0
    %974 = vmatpush2.msra.mxu0 0.0
    %975 = vmatprep.subr.mxu0 0.0
    %976 = vmatpush2.msra.mxu0 0.0
    %977 = vmatprep.subr.mxu0 0.0
    %978 = vmatpush2.msra.mxu0 0.0
    %979 = vmatprep.subr.mxu0 0.0
    %980 = vmatpush2.msra.mxu0 0.0
    %981 = vmatprep.subr.mxu0 0.0
    %982 = vmatpush2.msra.mxu0 0.0
    %983 = vmatprep.subr.mxu0 0.0
    %984 = vmatpush2.msra.mxu0 0.0
    %985 = vmatprep.subr.mxu0 0.0
    %986 = vmatpush2.msra.mxu0 0.0
    %987 = vmatprep.subr.mxu0 0.0
    %988 = vmatpush2.msra.mxu0 0.0
    %989 = vmatprep.subr.mxu0 0.0
    %990 = vmatpush2.msra.mxu0 0.0
    %991 = vmatprep.mubr.f32.mxu0 0.0
    %992 = vmatmul.mubr.f32.gmra.mxu0 %v926
    %v993 = vpop.f32.mrf.mxu0
    %v994 = vadd.f32 0.0, %v993
    %v995 = vpop.f32.mrf.mxu0
    %996 = vdwg.mxu0
    %v997 = vld [vmem:[#allocation5 + $0x940] sm:$0xff]
    %v998 = vld [vmem:[#allocation5 + $0x950] sm:$0xff]
    %v999 = vld [vmem:[#allocation5 + $0x960] sm:$0xff]
    %v1000 = vld [vmem:[#allocation5 + $0x970] sm:$0xff]
    %v1001 = vld [vmem:[#allocation5 + $0x980] sm:$0xff]
    %v1002 = vld [vmem:[#allocation5 + $0x990] sm:$0xff]
    %v1003 = vld [vmem:[#allocation5 + $0x9a0] sm:$0xff]
    %v1004 = vld [vmem:[#allocation5 + $0x9b0] sm:$0xff]
    %v1005 = vld [vmem:[#allocation5 + $0x9c0] sm:$0xff]
    %v1006 = vld [vmem:[#allocation5 + $0x9d0] sm:$0xff]
    %v1007 = vld [vmem:[#allocation5 + $0x9e0] sm:$0xff]
    %v1008 = vld [vmem:[#allocation5 + $0x9f0] sm:$0xff]
    %v1009 = vld [vmem:[#allocation5 + $0xa00] sm:$0xff]
    %v1010 = vld [vmem:[#allocation5 + $0xa10] sm:$0xff]
    %v1011 = vld [vmem:[#allocation5 + $0xa20] sm:$0xff]
    %v1012 = vld [vmem:[#allocation5 + $0xa30] sm:$0xff]
    %1013 = vmatprep.subr.mxu0 0.0
    %1014 = vmatpush1.msra.mxu0 %v1012
    %1015 = vmatprep.subr.mxu0 0.0
    %1016 = vmatpush1.msra.mxu0 %v1011
    %1017 = vmatprep.subr.mxu0 0.0
    %1018 = vmatpush1.msra.mxu0 %v1010
    %1019 = vmatprep.subr.mxu0 0.0
    %1020 = vmatpush1.msra.mxu0 %v1009
    %1021 = vmatprep.subr.mxu0 0.0
    %1022 = vmatpush1.msra.mxu0 %v1008
    %1023 = vmatprep.subr.mxu0 0.0
    %1024 = vmatpush1.msra.mxu0 %v1007
    %1025 = vmatprep.subr.mxu0 0.0
    %1026 = vmatpush1.msra.mxu0 %v1006
    %1027 = vmatprep.subr.mxu0 0.0
    %1028 = vmatpush1.msra.mxu0 %v1005
    %1029 = vmatprep.subr.mxu0 0.0
    %1030 = vmatpush1.msra.mxu0 %v1004
    %1031 = vmatprep.subr.mxu0 0.0
    %1032 = vmatpush1.msra.mxu0 %v1003
    %1033 = vmatprep.subr.mxu0 0.0
    %1034 = vmatpush1.msra.mxu0 %v1002
    %1035 = vmatprep.subr.mxu0 0.0
    %1036 = vmatpush1.msra.mxu0 %v1001
    %1037 = vmatprep.subr.mxu0 0.0
    %1038 = vmatpush1.msra.mxu0 %v1000
    %1039 = vmatprep.subr.mxu0 0.0
    %1040 = vmatpush1.msra.mxu0 %v999
    %1041 = vmatprep.subr.mxu0 0.0
    %1042 = vmatpush1.msra.mxu0 %v998
    %1043 = vmatprep.subr.mxu0 0.0
    %1044 = vmatpush1.msra.mxu0 %v997
    %1045 = vmatprep.subr.mxu0 0.0
    %1046 = vmatpush2.msra.mxu0 0.0
    %1047 = vmatprep.subr.mxu0 0.0
    %1048 = vmatpush2.msra.mxu0 0.0
    %1049 = vmatprep.subr.mxu0 0.0
    %1050 = vmatpush2.msra.mxu0 0.0
    %1051 = vmatprep.subr.mxu0 0.0
    %1052 = vmatpush2.msra.mxu0 0.0
    %1053 = vmatprep.subr.mxu0 0.0
    %1054 = vmatpush2.msra.mxu0 0.0
    %1055 = vmatprep.subr.mxu0 0.0
    %1056 = vmatpush2.msra.mxu0 0.0
    %1057 = vmatprep.subr.mxu0 0.0
    %1058 = vmatpush2.msra.mxu0 0.0
    %1059 = vmatprep.subr.mxu0 0.0
    %1060 = vmatpush2.msra.mxu0 0.0
    %1061 = vmatprep.subr.mxu0 0.0
    %1062 = vmatpush2.msra.mxu0 0.0
    %1063 = vmatprep.subr.mxu0 0.0
    %1064 = vmatpush2.msra.mxu0 0.0
    %1065 = vmatprep.subr.mxu0 0.0
    %1066 = vmatpush2.msra.mxu0 0.0
    %1067 = vmatprep.subr.mxu0 0.0
    %1068 = vmatpush2.msra.mxu0 0.0
    %1069 = vmatprep.subr.mxu0 0.0
    %1070 = vmatpush2.msra.mxu0 0.0
    %1071 = vmatprep.subr.mxu0 0.0
    %1072 = vmatpush2.msra.mxu0 0.0
    %1073 = vmatprep.subr.mxu0 0.0
    %1074 = vmatpush2.msra.mxu0 0.0
    %1075 = vmatprep.subr.mxu0 0.0
    %1076 = vmatpush2.msra.mxu0 0.0
    %1077 = vmatprep.mubr.f32.mxu0 0.0
    %1078 = vmatmul.mubr.f32.gmra.mxu0 %v994
    %v1079 = vpop.f32.mrf.mxu0
    %v1080 = vadd.f32 0.0, %v1079
    %v1081 = vpop.f32.mrf.mxu0
    %1082 = vdwg.mxu0
    %v1083 = vsub.f32 %v994, %v1080
    %v1084 = vmul.f32 %v1083, %v1083
    %1085 = vmatprep.subr.mxu0 0.0
    %1086 = vmatpush1.msra.mxu0 %v1012
    %1087 = vmatprep.subr.mxu0 0.0
    %1088 = vmatpush1.msra.mxu0 %v1011
    %1089 = vmatprep.subr.mxu0 0.0
    %1090 = vmatpush1.msra.mxu0 %v1010
    %1091 = vmatprep.subr.mxu0 0.0
    %1092 = vmatpush1.msra.mxu0 %v1009
    %1093 = vmatprep.subr.mxu0 0.0
    %1094 = vmatpush1.msra.mxu0 %v1008
    %1095 = vmatprep.subr.mxu0 0.0
    %1096 = vmatpush1.msra.mxu0 %v1007
    %1097 = vmatprep.subr.mxu0 0.0
    %1098 = vmatpush1.msra.mxu0 %v1006
    %1099 = vmatprep.subr.mxu0 0.0
    %1100 = vmatpush1.msra.mxu0 %v1005
    %1101 = vmatprep.subr.mxu0 0.0
    %1102 = vmatpush1.msra.mxu0 %v1004
    %1103 = vmatprep.subr.mxu0 0.0
    %1104 = vmatpush1.msra.mxu0 %v1003
    %1105 = vmatprep.subr.mxu0 0.0
    %1106 = vmatpush1.msra.mxu0 %v1002
    %1107 = vmatprep.subr.mxu0 0.0
    %1108 = vmatpush1.msra.mxu0 %v1001
    %1109 = vmatprep.subr.mxu0 0.0
    %1110 = vmatpush1.msra.mxu0 %v1000
    %1111 = vmatprep.subr.mxu0 0.0
    %1112 = vmatpush1.msra.mxu0 %v999
    %1113 = vmatprep.subr.mxu0 0.0
    %1114 = vmatpush1.msra.mxu0 %v998
    %1115 = vmatprep.subr.mxu0 0.0
    %1116 = vmatpush1.msra.mxu0 %v997
    %1117 = vmatprep.subr.mxu0 0.0
    %1118 = vmatpush2.msra.mxu0 0.0
    %1119 = vmatprep.subr.mxu0 0.0
    %1120 = vmatpush2.msra.mxu0 0.0
    %1121 = vmatprep.subr.mxu0 0.0
    %1122 = vmatpush2.msra.mxu0 0.0
    %1123 = vmatprep.subr.mxu0 0.0
    %1124 = vmatpush2.msra.mxu0 0.0
    %1125 = vmatprep.subr.mxu0 0.0
    %1126 = vmatpush2.msra.mxu0 0.0
    %1127 = vmatprep.subr.mxu0 0.0
    %1128 = vmatpush2.msra.mxu0 0.0
    %1129 = vmatprep.subr.mxu0 0.0
    %1130 = vmatpush2.msra.mxu0 0.0
    %1131 = vmatprep.subr.mxu0 0.0
    %1132 = vmatpush2.msra.mxu0 0.0
    %1133 = vmatprep.subr.mxu0 0.0
    %1134 = vmatpush2.msra.mxu0 0.0
    %1135 = vmatprep.subr.mxu0 0.0
    %1136 = vmatpush2.msra.mxu0 0.0
    %1137 = vmatprep.subr.mxu0 0.0
    %1138 = vmatpush2.msra.mxu0 0.0
    %1139 = vmatprep.subr.mxu0 0.0
    %1140 = vmatpush2.msra.mxu0 0.0
    %1141 = vmatprep.subr.mxu0 0.0
    %1142 = vmatpush2.msra.mxu0 0.0
    %1143 = vmatprep.subr.mxu0 0.0
    %1144 = vmatpush2.msra.mxu0 0.0
    %1145 = vmatprep.subr.mxu0 0.0
    %1146 = vmatpush2.msra.mxu0 0.0
    %1147 = vmatprep.subr.mxu0 0.0
    %1148 = vmatpush2.msra.mxu0 0.0
    %1149 = vmatprep.mubr.f32.mxu0 0.0
    %1150 = vmatmul.mubr.f32.gmra.mxu0 %v1084
    %v1151 = vpop.f32.mrf.mxu0
    %v1152 = vadd.f32 1e-05, %v1151
    %v1153 = vpop.f32.mrf.mxu0
    %1154 = vdwg.mxu0
    %v1155 = vrsqrt.pop %v1152
    %v1156 = vmul.f32 %v1083, %v1155
    %v1157 = vld [vmem:[#allocation5 + $0xb43] ss:$0 sm:$0xff]
    %v1158 = vmul.f32 %v1156, %v1157
    %v1159 = vld [vmem:[#allocation5 + $0xb44] ss:$0 sm:$0xff]
    %v1160 = vadd.f32 %v1158, %v1159
    %v1161 = vld [vmem:[#allocation5 + $0xa40] sm:$0xff]
    %v1162 = vld [vmem:[#allocation5 + $0xa50] sm:$0xff]
    %v1163 = vld [vmem:[#allocation5 + $0xa60] sm:$0xff]
    %v1164 = vld [vmem:[#allocation5 + $0xa70] sm:$0xff]
    %v1165 = vld [vmem:[#allocation5 + $0xa80] sm:$0xff]
    %v1166 = vld [vmem:[#allocation5 + $0xa90] sm:$0xff]
    %v1167 = vld [vmem:[#allocation5 + $0xaa0] sm:$0xff]
    %v1168 = vld [vmem:[#allocation5 + $0xab0] sm:$0xff]
    %v1169 = vld [vmem:[#allocation5 + $0xac0] sm:$0xff]
    %v1170 = vld [vmem:[#allocation5 + $0xad0] sm:$0xff]
    %v1171 = vld [vmem:[#allocation5 + $0xae0] sm:$0xff]
    %v1172 = vld [vmem:[#allocation5 + $0xaf0] sm:$0xff]
    %v1173 = vld [vmem:[#allocation5 + $0xb00] sm:$0xff]
    %v1174 = vld [vmem:[#allocation5 + $0xb10] sm:$0xff]
    %v1175 = vld [vmem:[#allocation5 + $0xb20] sm:$0xff]
    %v1176 = vld [vmem:[#allocation5 + $0xb30] sm:$0xff]
    %v1177 = vld [vmem:[#allocation5 + $0xb45] ss:$0 sm:$0xff]
    %1178 = vmatprep.subr.mxu0 0.0
    %1179 = vmatpush1.msra.mxu0 %v1176
    %1180 = vmatprep.subr.mxu0 0.0
    %1181 = vmatpush1.msra.mxu0 %v1175
    %1182 = vmatprep.subr.mxu0 0.0
    %1183 = vmatpush1.msra.mxu0 %v1174
    %1184 = vmatprep.subr.mxu0 0.0
    %1185 = vmatpush1.msra.mxu0 %v1173
    %1186 = vmatprep.subr.mxu0 0.0
    %1187 = vmatpush1.msra.mxu0 %v1172
    %1188 = vmatprep.subr.mxu0 0.0
    %1189 = vmatpush1.msra.mxu0 %v1171
    %1190 = vmatprep.subr.mxu0 0.0
    %1191 = vmatpush1.msra.mxu0 %v1170
    %1192 = vmatprep.subr.mxu0 0.0
    %1193 = vmatpush1.msra.mxu0 %v1169
    %1194 = vmatprep.subr.mxu0 0.0
    %1195 = vmatpush1.msra.mxu0 %v1168
    %1196 = vmatprep.subr.mxu0 0.0
    %1197 = vmatpush1.msra.mxu0 %v1167
    %1198 = vmatprep.subr.mxu0 0.0
    %1199 = vmatpush1.msra.mxu0 %v1166
    %1200 = vmatprep.subr.mxu0 0.0
    %1201 = vmatpush1.msra.mxu0 %v1165
    %1202 = vmatprep.subr.mxu0 0.0
    %1203 = vmatpush1.msra.mxu0 %v1164
    %1204 = vmatprep.subr.mxu0 0.0
    %1205 = vmatpush1.msra.mxu0 %v1163
    %1206 = vmatprep.subr.mxu0 0.0
    %1207 = vmatpush1.msra.mxu0 %v1162
    %1208 = vmatprep.subr.mxu0 0.0
    %1209 = vmatpush1.msra.mxu0 %v1161
    %1210 = vmatprep.subr.mxu0 0.0
    %1211 = vmatpush2.msra.mxu0 0.0
    %1212 = vmatprep.subr.mxu0 0.0
    %1213 = vmatpush2.msra.mxu0 0.0
    %1214 = vmatprep.subr.mxu0 0.0
    %1215 = vmatpush2.msra.mxu0 0.0
    %1216 = vmatprep.subr.mxu0 0.0
    %1217 = vmatpush2.msra.mxu0 0.0
    %1218 = vmatprep.subr.mxu0 0.0
    %1219 = vmatpush2.msra.mxu0 0.0
    %1220 = vmatprep.subr.mxu0 0.0
    %1221 = vmatpush2.msra.mxu0 0.0
    %1222 = vmatprep.subr.mxu0 0.0
    %1223 = vmatpush2.msra.mxu0 0.0
    %1224 = vmatprep.subr.mxu0 0.0
    %1225 = vmatpush2.msra.mxu0 0.0
    %1226 = vmatprep.subr.mxu0 0.0
    %1227 = vmatpush2.msra.mxu0 0.0
    %1228 = vmatprep.subr.mxu0 0.0
    %1229 = vmatpush2.msra.mxu0 0.0
    %1230 = vmatprep.subr.mxu0 0.0
    %1231 = vmatpush2.msra.mxu0 0.0
    %1232 = vmatprep.subr.mxu0 0.0
    %1233 = vmatpush2.msra.mxu0 0.0
    %1234 = vmatprep.subr.mxu0 0.0
    %1235 = vmatpush2.msra.mxu0 0.0
    %1236 = vmatprep.subr.mxu0 0.0
    %1237 = vmatpush2.msra.mxu0 0.0
    %1238 = vmatprep.subr.mxu0 0.0
    %1239 = vmatpush2.msra.mxu0 0.0
    %1240 = vmatprep.subr.mxu0 0.0
    %1241 = vmatpush2.msra.mxu0 0.0
    %1242 = vmatprep.mubr.f32.mxu0 0.0
    %1243 = vmatmul.mubr.f32.gmra.mxu0 %v1160
    %v1244 = vpop.f32.mrf.mxu0
    %v1245 = vadd.f32 %v1177, %v1244
    %v1246 = vpop.f32.mrf.mxu0
    %1247 = vdwg.mxu0
    %v1248 = vsub.f32 %v1245, %v70
    %v1249 = vadd.f32 %v38, 1e-10
    %v1250 = vrcp.pop %v1249
    %1252 = vset.pattern.permute.xlu0 0
    %1253 = vperm.xlu0 %1252, %v1250
    %v1254 = vpop.permute.xlu0 %1253
    %v1256 = vmul.f32 %v1248, %v1254
    %v1257 = vmul.f32 %v1256, %v59
    %v1258 = vadd.f32 %v1257, %v45
    %vm1259 = vcmask 130048
    %1260 = vst.msk [vmem:[#allocation7] sm:$0xff] %vm1259, %v1258
    // Predicated region
    $region18: #{patchtsw_forward.1} parent=1 // pred_check
      _
    $region19: #{patchtsw_forward.1} parent=1 // pred_check_branch
      %1262 = sbr.rel (0) target = $region21
    $region20: #{patchtsw_forward.1} parent=1 // pred_region
      %s1264 = ssub.s32 128, 128
      %1265 = vsyncadd [#allocation4], %s1264
      %s1267 = sshll.u32 [#allocation7], 4
      %s1268 = int_to_ptr.vmem [resolvable:$true] %s1267
      %1270 = dma.vmem_to_hbm [thread:$0]  %s1268, 128, %s2, [#allocation4]
    $region21: #{patchtsw_forward.1} parent=1 // pred_fallthru
      _
    // Predicated region
    $region22: #{patchtsw_forward.1} parent=1 // pred_check
      _
    $region23: #{patchtsw_forward.1} parent=1 // pred_check_branch
      %1272 = sbr.rel (0) target = $region25
    $region24: #{patchtsw_forward.1} parent=1 // pred_region
      %1273 = dma.done [#allocation4], 128
    $region25: #{patchtsw_forward.1} parent=1 // pred_fallthru
      _
    %1274 = vsyncpa [#allocation3], 1
    %1275 = vsyncpa [#allocation6], 1
    %1276 = vsyncpa [#allocation4], 1

</llo_original>
